<compile_context>
chip_gen: v7x
topology: tpu7x:2x2x1
jax: 0.10.0
libtpu: 0.0.40
codegen_flags: <defaults>
</compile_context>

<pallas_src>
import functools

import jax
import jax.numpy as jnp
from jax.experimental import pallas as pl
from jax.experimental.pallas import tpu as pltpu

INPUT_SIZE = 4      # total channels after concat (x_input + x_history)
HIDDEN_SIZE = 16
OUT_SIZE = 2
MAX_BATCH_TILE = 128


def _round_up(x, m):
    return (x + m - 1) // m * m


def _rnn_seq_kernel(xin_ref, xh_ref, w_in_ref, w_hist_ref, w_hh_ref, b_ref,
                    w_fc_ref, b_fc_ref, out_ref):
    """One grid step = one batch tile, full sequence (time-major layout).

    xin_ref   : (L, TB, C1)   x_input slice for this batch tile
    xh_ref    : (L, TB, C2)   x_history slice
    w_in_ref  : (C1, H)       W_ih[:, :C1]^T
    w_hist_ref: (C2, H)       W_ih[:, C1:]^T
    w_hh_ref  : (H, H)        W_hh^T
    b_ref     : (1, H)        b_ih + b_hh
    w_fc_ref  : (H, O)        W_fc^T
    b_fc_ref  : (1, O)
    out_ref   : (L, TB, O)
    """
    L, TB, _ = xin_ref.shape
    H = w_hh_ref.shape[0]

    # Loop-invariant weights: load once, keep in vregs across the recurrence.
    w_in = w_in_ref[...]
    w_hist = w_hist_ref[...]
    w_hh = w_hh_ref[...]
    b = b_ref[...]
    w_fc = w_fc_ref[...]
    b_fc = b_fc_ref[...]

    def step(t, h_prev):
        pre = (jnp.dot(xin_ref[t], w_in, preferred_element_type=jnp.float32)
               + jnp.dot(xh_ref[t], w_hist, preferred_element_type=jnp.float32)
               + jnp.dot(h_prev, w_hh, preferred_element_type=jnp.float32)
               + b)
        h = jnp.tanh(pre)                                   # EUP
        out_ref[t] = (jnp.dot(h, w_fc, preferred_element_type=jnp.float32)
                      + b_fc)
        return h

    h0 = jnp.zeros((TB, H), jnp.float32)
    unroll = True if L <= 32 else 4
    jax.lax.fori_loop(0, L, step, h0, unroll=unroll)


@functools.partial(jax.jit, static_argnames=())
def rnn_sequence_model(x_input, x_history, w_ih, b_ih, w_hh, b_hh, w_fc, b_fc):
    """x_input: (B, L, C1), x_history: (B, L, C2), C1 + C2 == INPUT_SIZE.

    Torch parameter layouts:
      w_ih: (H, INPUT_SIZE), b_ih: (H,), w_hh: (H, H), b_hh: (H,),
      w_fc: (2, H),          b_fc: (2,)
    Returns (B, L, 2) float32.
    """
    B, L, C1 = x_input.shape
    _, _, C2 = x_history.shape
    H = w_hh.shape[0]
    O = w_fc.shape[0]
    assert C1 + C2 == w_ih.shape[1]

    # Batch tiling: pad B to a sublane-aligned tile, grid over batch tiles.
    TB = min(_round_up(B, 8), MAX_BATCH_TILE)
    B_pad = _round_up(B, TB)
    n_bt = B_pad // TB

    # Time-major, batch-padded inputs (layout plumbing only; no concat/pad of
    # the concatenated feature tensor is ever materialised).
    def prep(x):
        x = x.astype(jnp.float32)
        x = jnp.pad(x, ((0, B_pad - B), (0, 0), (0, 0)))
        return jnp.transpose(x, (1, 0, 2))                  # (L, B_pad, C)

    xin_t = prep(x_input)
    xh_t = prep(x_history)

    # Repack weights for the kernel (conv-free RNN cell, right-multiplying).
    w_in_k = jnp.transpose(w_ih[:, :C1]).astype(jnp.float32)    # (C1, H)
    w_hist_k = jnp.transpose(w_ih[:, C1:]).astype(jnp.float32)  # (C2, H)
    w_hh_k = jnp.transpose(w_hh).astype(jnp.float32)            # (H, H)
    b_k = (b_ih + b_hh).reshape(1, H).astype(jnp.float32)       # (1, H)
    w_fc_k = jnp.transpose(w_fc).astype(jnp.float32)            # (H, O)
    b_fc_k = b_fc.reshape(1, O).astype(jnp.float32)             # (1, O)

    grid_spec = pltpu.PrefetchScalarGridSpec(
        num_scalar_prefetch=0,
        grid=(n_bt,),
        in_specs=[
            pl.BlockSpec((L, TB, C1), lambda bt: (0, bt, 0)),
            pl.BlockSpec((L, TB, C2), lambda bt: (0, bt, 0)),
            pl.BlockSpec((C1, H), lambda bt: (0, 0)),
            pl.BlockSpec((C2, H), lambda bt: (0, 0)),
            pl.BlockSpec((H, H), lambda bt: (0, 0)),
            pl.BlockSpec((1, H), lambda bt: (0, 0)),
            pl.BlockSpec((H, O), lambda bt: (0, 0)),
            pl.BlockSpec((1, O), lambda bt: (0, 0)),
        ],
        out_specs=pl.BlockSpec((L, TB, O), lambda bt: (0, bt, 0)),
    )

    flops = 2 * B_pad * L * ((C1 + C2) * H + H * H + H * O)
    bytes_accessed = 4 * (B_pad * L * (C1 + C2 + O)
                          + (C1 + C2) * H + H * H + H * O + H + O)
    cost = pl.CostEstimate(flops=flops,
                           transcendentals=B_pad * L * H,
                           bytes_accessed=bytes_accessed)

    out_t = pl.pallas_call(
        _rnn_seq_kernel,
        out_shape=jax.ShapeDtypeStruct((L, B_pad, O), jnp.float32),
        grid_spec=grid_spec,
        compiler_params=pltpu.CompilerParams(
            dimension_semantics=("parallel",)),
        cost_estimate=cost,
    )(xin_t, xh_t, w_in_k, w_hist_k, w_hh_k, b_k, w_fc_k, b_fc_k)

    # (L, B_pad, O) -> (B, L, O)
    return jnp.transpose(out_t, (1, 0, 2))[:B]


def _reference_forward(x_input, x_history, w_ih, b_ih, w_hh, b_hh, w_fc, b_fc):
    """Pure-JAX reference matching torch nn.RNN(tanh) + Linear semantics."""
    seq = jnp.concatenate([x_input, x_history], axis=2).astype(jnp.float32)
    B, L, _ = seq.shape
    H = w_hh.shape[0]

    def cell(h, x_t):
        h_new = jnp.tanh(x_t @ w_ih.T + b_ih + h @ w_hh.T + b_hh)
        return h_new, h_new

    h0 = jnp.zeros((B, H), jnp.float32)
    _, hs = jax.lax.scan(cell, h0, jnp.transpose(seq, (1, 0, 2)))  # (L, B, H)
    hs = jnp.transpose(hs, (1, 0, 2))                              # (B, L, H)
    return hs @ w_fc.T + b_fc


def _init_params(key):
    """Deterministic init mimicking torch defaults (uniform +-1/sqrt(fan))."""
    k1, k2, k3, k4, k5, k6 = jax.random.split(key, 6)
    r_bound = 1.0 / jnp.sqrt(HIDDEN_SIZE)        # nn.RNN default
    f_bound = 1.0 / jnp.sqrt(HIDDEN_SIZE)        # Linear fan_in = hidden
    w_ih = jax.random.uniform(k1, (HIDDEN_SIZE, INPUT_SIZE), jnp.float32,
                              -r_bound, r_bound)
    w_hh = jax.random.uniform(k2, (HIDDEN_SIZE, HIDDEN_SIZE), jnp.float32,
                              -r_bound, r_bound)
    b_ih = jax.random.uniform(k3, (HIDDEN_SIZE,), jnp.float32, -r_bound, r_bound)
    b_hh = jax.random.uniform(k4, (HIDDEN_SIZE,), jnp.float32, -r_bound, r_bound)
    w_fc = jax.random.uniform(k5, (OUT_SIZE, HIDDEN_SIZE), jnp.float32,
                              -f_bound, f_bound)
    b_fc = jax.random.uniform(k6, (OUT_SIZE,), jnp.float32, -f_bound, f_bound)
    return w_ih, b_ih, w_hh, b_hh, w_fc, b_fc


if __name__ == "__main__":
    key = jax.random.PRNGKey(0)
    kp, kx, kh = jax.random.split(key, 3)

    B, L = 2, 8
    C1, C2 = 2, 2  # C1 + C2 == INPUT_SIZE == 4
    x_input = jax.random.normal(kx, (B, L, C1), jnp.float32)
    x_history = jax.random.normal(kh, (B, L, C2), jnp.float32)

    w_ih, b_ih, w_hh, b_hh, w_fc, b_fc = _init_params(kp)

    out = rnn_sequence_model(x_input, x_history,
                             w_ih, b_ih, w_hh, b_hh, w_fc, b_fc)
    out = jax.block_until_ready(out)

    ref = _reference_forward(x_input, x_history,
                             w_ih, b_ih, w_hh, b_hh, w_fc, b_fc)
    assert out.shape == (B, L, OUT_SIZE), out.shape
    assert jnp.allclose(out, ref, atol=1e-4, rtol=1e-4), (
        float(jnp.max(jnp.abs(out - ref))))

    print("KERNEL_OK")
</pallas_src>

<mosaic_0001>
module attributes {stable_mosaic.version = 11 : i64} {
  func.func @_rnn_seq_kernel(%arg0: i32, %arg1: memref<8x8x2xf32, #tpu.memory_space<vmem>>, %arg2: memref<8x8x2xf32, #tpu.memory_space<vmem>>, %arg3: memref<2x16xf32, #tpu.memory_space<vmem>>, %arg4: memref<2x16xf32, #tpu.memory_space<vmem>>, %arg5: memref<16x16xf32, #tpu.memory_space<vmem>>, %arg6: memref<1x16xf32, #tpu.memory_space<vmem>>, %arg7: memref<16x2xf32, #tpu.memory_space<vmem>>, %arg8: memref<1x2xf32, #tpu.memory_space<vmem>>, %arg9: memref<8x8x2xf32, #tpu.memory_space<vmem>>) attributes {dimension_semantics = [#tpu.dimension_semantics<parallel>], iteration_bounds = array<i64: 1>, scalar_prefetch = 0 : i64, scratch_operands = 0 : i64, tpu.core_type = #tpu.core_type<tc>, window_params = [{transform_indices = @transform_0, window_bounds = array<i64: 8, 8, 2>}, {transform_indices = @transform_1, window_bounds = array<i64: 8, 8, 2>}, {pipeline_mode = #tpu.pipeline_mode<synchronous>, transform_indices = @transform_2, window_bounds = array<i64: 2, 16>}, {pipeline_mode = #tpu.pipeline_mode<synchronous>, transform_indices = @transform_3, window_bounds = array<i64: 2, 16>}, {pipeline_mode = #tpu.pipeline_mode<synchronous>, transform_indices = @transform_4, window_bounds = array<i64: 16, 16>}, {pipeline_mode = #tpu.pipeline_mode<synchronous>, transform_indices = @transform_5, window_bounds = array<i64: 1, 16>}, {pipeline_mode = #tpu.pipeline_mode<synchronous>, transform_indices = @transform_6, window_bounds = array<i64: 16, 2>}, {pipeline_mode = #tpu.pipeline_mode<synchronous>, transform_indices = @transform_7, window_bounds = array<i64: 1, 2>}, {transform_indices = @transform_8, window_bounds = array<i64: 8, 8, 2>}]} {
    %c0 = arith.constant 0 : index
    %c0_0 = arith.constant 0 : index
    %0 = vector.load %arg3[%c0, %c0_0] : memref<2x16xf32, #tpu.memory_space<vmem>>, vector<2x16xf32>
    %c0_1 = arith.constant 0 : index
    %c0_2 = arith.constant 0 : index
    %1 = vector.load %arg4[%c0_1, %c0_2] : memref<2x16xf32, #tpu.memory_space<vmem>>, vector<2x16xf32>
    %c0_3 = arith.constant 0 : index
    %c0_4 = arith.constant 0 : index
    %2 = vector.load %arg5[%c0_3, %c0_4] : memref<16x16xf32, #tpu.memory_space<vmem>>, vector<16x16xf32>
    %c0_5 = arith.constant 0 : index
    %c0_6 = arith.constant 0 : index
    %3 = vector.load %arg6[%c0_5, %c0_6] : memref<1x16xf32, #tpu.memory_space<vmem>>, vector<1x16xf32>
    %c0_7 = arith.constant 0 : index
    %c0_8 = arith.constant 0 : index
    %4 = vector.load %arg7[%c0_7, %c0_8] : memref<16x2xf32, #tpu.memory_space<vmem>>, vector<16x2xf32>
    %c0_9 = arith.constant 0 : index
    %c0_10 = arith.constant 0 : index
    %5 = vector.load %arg8[%c0_9, %c0_10] : memref<1x2xf32, #tpu.memory_space<vmem>>, vector<1x2xf32>
    %cst = arith.constant 0.000000e+00 : f32
    %6 = vector.broadcast %cst : f32 to vector<8x16xf32>
    %c0_i32 = arith.constant 0 : i32
    %7 = arith.index_cast %c0_i32 : i32 to index
    %c0_11 = arith.constant 0 : index
    %c0_12 = arith.constant 0 : index
    %8 = vector.load %arg1[%7, %c0_11, %c0_12] : memref<8x8x2xf32, #tpu.memory_space<vmem>>, vector<1x8x2xf32>
    %9 = vector.shape_cast %8 : vector<1x8x2xf32> to vector<8x2xf32>
    %cst_13 = arith.constant dense<0.000000e+00> : vector<8x16xf32>
    %10 = tpu.matmul %9, %0, %cst_13 {dimension_numbers = #tpu.dot_dimension_numbers<[1], [0], [0], [1], [0, 0, 1, 1], [], []>} : vector<8x2xf32>, vector<2x16xf32>, vector<8x16xf32> -> vector<8x16xf32>
    %11 = arith.index_cast %c0_i32 : i32 to index
    %c0_14 = arith.constant 0 : index
    %c0_15 = arith.constant 0 : index
    %12 = vector.load %arg2[%11, %c0_14, %c0_15] : memref<8x8x2xf32, #tpu.memory_space<vmem>>, vector<1x8x2xf32>
    %13 = vector.shape_cast %12 : vector<1x8x2xf32> to vector<8x2xf32>
    %cst_16 = arith.constant dense<0.000000e+00> : vector<8x16xf32>
    %14 = tpu.matmul %13, %1, %cst_16 {dimension_numbers = #tpu.dot_dimension_numbers<[1], [0], [0], [1], [0, 0, 1, 1], [], []>} : vector<8x2xf32>, vector<2x16xf32>, vector<8x16xf32> -> vector<8x16xf32>
    %15 = arith.addf %10, %14 : vector<8x16xf32>
    %cst_17 = arith.constant dense<0.000000e+00> : vector<8x16xf32>
    %16 = tpu.matmul %6, %2, %cst_17 {dimension_numbers = #tpu.dot_dimension_numbers<[1], [0], [0], [1], [0, 0, 1, 1], [], []>} : vector<8x16xf32>, vector<16x16xf32>, vector<8x16xf32> -> vector<8x16xf32>
    %17 = arith.addf %15, %16 : vector<8x16xf32>
    %18 = vector.broadcast %3 : vector<1x16xf32> to vector<8x16xf32>
    %19 = arith.addf %17, %18 : vector<8x16xf32>
    %20 = math.tanh %19 : vector<8x16xf32>
    %cst_18 = arith.constant dense<0.000000e+00> : vector<8x2xf32>
    %21 = tpu.matmul %20, %4, %cst_18 {dimension_numbers = #tpu.dot_dimension_numbers<[1], [0], [0], [1], [0, 0, 1, 1], [], []>} : vector<8x16xf32>, vector<16x2xf32>, vector<8x2xf32> -> vector<8x2xf32>
    %22 = vector.broadcast %5 : vector<1x2xf32> to vector<8x2xf32>
    %23 = arith.addf %21, %22 : vector<8x2xf32>
    %24 = arith.index_cast %c0_i32 : i32 to index
    %c0_19 = arith.constant 0 : index
    %c0_20 = arith.constant 0 : index
    %25 = vector.load %arg9[%24, %c0_19, %c0_20] : memref<8x8x2xf32, #tpu.memory_space<vmem>>, vector<1x8x2xf32>
    %26 = vector.shape_cast %25 : vector<1x8x2xf32> to vector<8x2xf32>
    %27 = vector.shape_cast %23 : vector<8x2xf32> to vector<1x8x2xf32>
    tpu.vector_store %arg9[%24, %c0_19, %c0_20], %27 {strides = array<i32>} : memref<8x8x2xf32, #tpu.memory_space<vmem>>, vector<1x8x2xf32>,
    %c1_i32 = arith.constant 1 : i32
    %28 = arith.index_cast %c1_i32 : i32 to index
    %c0_21 = arith.constant 0 : index
    %c0_22 = arith.constant 0 : index
    %29 = vector.load %arg1[%28, %c0_21, %c0_22] : memref<8x8x2xf32, #tpu.memory_space<vmem>>, vector<1x8x2xf32>
    %30 = vector.shape_cast %29 : vector<1x8x2xf32> to vector<8x2xf32>
    %cst_23 = arith.constant dense<0.000000e+00> : vector<8x16xf32>
    %31 = tpu.matmul %30, %0, %cst_23 {dimension_numbers = #tpu.dot_dimension_numbers<[1], [0], [0], [1], [0, 0, 1, 1], [], []>} : vector<8x2xf32>, vector<2x16xf32>, vector<8x16xf32> -> vector<8x16xf32>
    %32 = arith.index_cast %c1_i32 : i32 to index
    %c0_24 = arith.constant 0 : index
    %c0_25 = arith.constant 0 : index
    %33 = vector.load %arg2[%32, %c0_24, %c0_25] : memref<8x8x2xf32, #tpu.memory_space<vmem>>, vector<1x8x2xf32>
    %34 = vector.shape_cast %33 : vector<1x8x2xf32> to vector<8x2xf32>
    %cst_26 = arith.constant dense<0.000000e+00> : vector<8x16xf32>
    %35 = tpu.matmul %34, %1, %cst_26 {dimension_numbers = #tpu.dot_dimension_numbers<[1], [0], [0], [1], [0, 0, 1, 1], [], []>} : vector<8x2xf32>, vector<2x16xf32>, vector<8x16xf32> -> vector<8x16xf32>
    %36 = arith.addf %31, %35 : vector<8x16xf32>
    %cst_27 = arith.constant dense<0.000000e+00> : vector<8x16xf32>
    %37 = tpu.matmul %20, %2, %cst_27 {dimension_numbers = #tpu.dot_dimension_numbers<[1], [0], [0], [1], [0, 0, 1, 1], [], []>} : vector<8x16xf32>, vector<16x16xf32>, vector<8x16xf32> -> vector<8x16xf32>
    %38 = arith.addf %36, %37 : vector<8x16xf32>
    %39 = vector.broadcast %3 : vector<1x16xf32> to vector<8x16xf32>
    %40 = arith.addf %38, %39 : vector<8x16xf32>
    %41 = math.tanh %40 : vector<8x16xf32>
    %cst_28 = arith.constant dense<0.000000e+00> : vector<8x2xf32>
    %42 = tpu.matmul %41, %4, %cst_28 {dimension_numbers = #tpu.dot_dimension_numbers<[1], [0], [0], [1], [0, 0, 1, 1], [], []>} : vector<8x16xf32>, vector<16x2xf32>, vector<8x2xf32> -> vector<8x2xf32>
    %43 = vector.broadcast %5 : vector<1x2xf32> to vector<8x2xf32>
    %44 = arith.addf %42, %43 : vector<8x2xf32>
    %45 = arith.index_cast %c1_i32 : i32 to index
    %c0_29 = arith.constant 0 : index
    %c0_30 = arith.constant 0 : index
    %46 = vector.load %arg9[%45, %c0_29, %c0_30] : memref<8x8x2xf32, #tpu.memory_space<vmem>>, vector<1x8x2xf32>
    %47 = vector.shape_cast %46 : vector<1x8x2xf32> to vector<8x2xf32>
    %48 = vector.shape_cast %44 : vector<8x2xf32> to vector<1x8x2xf32>
    tpu.vector_store %arg9[%45, %c0_29, %c0_30], %48 {strides = array<i32>} : memref<8x8x2xf32, #tpu.memory_space<vmem>>, vector<1x8x2xf32>,
    %c2_i32 = arith.constant 2 : i32
    %49 = arith.index_cast %c2_i32 : i32 to index
    %c0_31 = arith.constant 0 : index
    %c0_32 = arith.constant 0 : index
    %50 = vector.load %arg1[%49, %c0_31, %c0_32] : memref<8x8x2xf32, #tpu.memory_space<vmem>>, vector<1x8x2xf32>
    %51 = vector.shape_cast %50 : vector<1x8x2xf32> to vector<8x2xf32>
    %cst_33 = arith.constant dense<0.000000e+00> : vector<8x16xf32>
    %52 = tpu.matmul %51, %0, %cst_33 {dimension_numbers = #tpu.dot_dimension_numbers<[1], [0], [0], [1], [0, 0, 1, 1], [], []>} : vector<8x2xf32>, vector<2x16xf32>, vector<8x16xf32> -> vector<8x16xf32>
    %53 = arith.index_cast %c2_i32 : i32 to index
    %c0_34 = arith.constant 0 : index
    %c0_35 = arith.constant 0 : index
    %54 = vector.load %arg2[%53, %c0_34, %c0_35] : memref<8x8x2xf32, #tpu.memory_space<vmem>>, vector<1x8x2xf32>
    %55 = vector.shape_cast %54 : vector<1x8x2xf32> to vector<8x2xf32>
    %cst_36 = arith.constant dense<0.000000e+00> : vector<8x16xf32>
    %56 = tpu.matmul %55, %1, %cst_36 {dimension_numbers = #tpu.dot_dimension_numbers<[1], [0], [0], [1], [0, 0, 1, 1], [], []>} : vector<8x2xf32>, vector<2x16xf32>, vector<8x16xf32> -> vector<8x16xf32>
    %57 = arith.addf %52, %56 : vector<8x16xf32>
    %cst_37 = arith.constant dense<0.000000e+00> : vector<8x16xf32>
    %58 = tpu.matmul %41, %2, %cst_37 {dimension_numbers = #tpu.dot_dimension_numbers<[1], [0], [0], [1], [0, 0, 1, 1], [], []>} : vector<8x16xf32>, vector<16x16xf32>, vector<8x16xf32> -> vector<8x16xf32>
    %59 = arith.addf %57, %58 : vector<8x16xf32>
    %60 = vector.broadcast %3 : vector<1x16xf32> to vector<8x16xf32>
    %61 = arith.addf %59, %60 : vector<8x16xf32>
    %62 = math.tanh %61 : vector<8x16xf32>
    %cst_38 = arith.constant dense<0.000000e+00> : vector<8x2xf32>
    %63 = tpu.matmul %62, %4, %cst_38 {dimension_numbers = #tpu.dot_dimension_numbers<[1], [0], [0], [1], [0, 0, 1, 1], [], []>} : vector<8x16xf32>, vector<16x2xf32>, vector<8x2xf32> -> vector<8x2xf32>
    %64 = vector.broadcast %5 : vector<1x2xf32> to vector<8x2xf32>
    %65 = arith.addf %63, %64 : vector<8x2xf32>
    %66 = arith.index_cast %c2_i32 : i32 to index
    %c0_39 = arith.constant 0 : index
    %c0_40 = arith.constant 0 : index
    %67 = vector.load %arg9[%66, %c0_39, %c0_40] : memref<8x8x2xf32, #tpu.memory_space<vmem>>, vector<1x8x2xf32>
    %68 = vector.shape_cast %67 : vector<1x8x2xf32> to vector<8x2xf32>
    %69 = vector.shape_cast %65 : vector<8x2xf32> to vector<1x8x2xf32>
    tpu.vector_store %arg9[%66, %c0_39, %c0_40], %69 {strides = array<i32>} : memref<8x8x2xf32, #tpu.memory_space<vmem>>, vector<1x8x2xf32>,
    %c3_i32 = arith.constant 3 : i32
    %70 = arith.index_cast %c3_i32 : i32 to index
    %c0_41 = arith.constant 0 : index
    %c0_42 = arith.constant 0 : index
    %71 = vector.load %arg1[%70, %c0_41, %c0_42] : memref<8x8x2xf32, #tpu.memory_space<vmem>>, vector<1x8x2xf32>
    %72 = vector.shape_cast %71 : vector<1x8x2xf32> to vector<8x2xf32>
    %cst_43 = arith.constant dense<0.000000e+00> : vector<8x16xf32>
    %73 = tpu.matmul %72, %0, %cst_43 {dimension_numbers = #tpu.dot_dimension_numbers<[1], [0], [0], [1], [0, 0, 1, 1], [], []>} : vector<8x2xf32>, vector<2x16xf32>, vector<8x16xf32> -> vector<8x16xf32>
    %74 = arith.index_cast %c3_i32 : i32 to index
    %c0_44 = arith.constant 0 : index
    %c0_45 = arith.constant 0 : index
    %75 = vector.load %arg2[%74, %c0_44, %c0_45] : memref<8x8x2xf32, #tpu.memory_space<vmem>>, vector<1x8x2xf32>
    %76 = vector.shape_cast %75 : vector<1x8x2xf32> to vector<8x2xf32>
    %cst_46 = arith.constant dense<0.000000e+00> : vector<8x16xf32>
    %77 = tpu.matmul %76, %1, %cst_46 {dimension_numbers = #tpu.dot_dimension_numbers<[1], [0], [0], [1], [0, 0, 1, 1], [], []>} : vector<8x2xf32>, vector<2x16xf32>, vector<8x16xf32> -> vector<8x16xf32>
    %78 = arith.addf %73, %77 : vector<8x16xf32>
    %cst_47 = arith.constant dense<0.000000e+00> : vector<8x16xf32>
    %79 = tpu.matmul %62, %2, %cst_47 {dimension_numbers = #tpu.dot_dimension_numbers<[1], [0], [0], [1], [0, 0, 1, 1], [], []>} : vector<8x16xf32>, vector<16x16xf32>, vector<8x16xf32> -> vector<8x16xf32>
    %80 = arith.addf %78, %79 : vector<8x16xf32>
    %81 = vector.broadcast %3 : vector<1x16xf32> to vector<8x16xf32>
    %82 = arith.addf %80, %81 : vector<8x16xf32>
    %83 = math.tanh %82 : vector<8x16xf32>
    %cst_48 = arith.constant dense<0.000000e+00> : vector<8x2xf32>
    %84 = tpu.matmul %83, %4, %cst_48 {dimension_numbers = #tpu.dot_dimension_numbers<[1], [0], [0], [1], [0, 0, 1, 1], [], []>} : vector<8x16xf32>, vector<16x2xf32>, vector<8x2xf32> -> vector<8x2xf32>
    %85 = vector.broadcast %5 : vector<1x2xf32> to vector<8x2xf32>
    %86 = arith.addf %84, %85 : vector<8x2xf32>
    %87 = arith.index_cast %c3_i32 : i32 to index
    %c0_49 = arith.constant 0 : index
    %c0_50 = arith.constant 0 : index
    %88 = vector.load %arg9[%87, %c0_49, %c0_50] : memref<8x8x2xf32, #tpu.memory_space<vmem>>, vector<1x8x2xf32>
    %89 = vector.shape_cast %88 : vector<1x8x2xf32> to vector<8x2xf32>
    %90 = vector.shape_cast %86 : vector<8x2xf32> to vector<1x8x2xf32>
    tpu.vector_store %arg9[%87, %c0_49, %c0_50], %90 {strides = array<i32>} : memref<8x8x2xf32, #tpu.memory_space<vmem>>, vector<1x8x2xf32>,
    %c4_i32 = arith.constant 4 : i32
    %91 = arith.index_cast %c4_i32 : i32 to index
    %c0_51 = arith.constant 0 : index
    %c0_52 = arith.constant 0 : index
    %92 = vector.load %arg1[%91, %c0_51, %c0_52] : memref<8x8x2xf32, #tpu.memory_space<vmem>>, vector<1x8x2xf32>
    %93 = vector.shape_cast %92 : vector<1x8x2xf32> to vector<8x2xf32>
    %cst_53 = arith.constant dense<0.000000e+00> : vector<8x16xf32>
    %94 = tpu.matmul %93, %0, %cst_53 {dimension_numbers = #tpu.dot_dimension_numbers<[1], [0], [0], [1], [0, 0, 1, 1], [], []>} : vector<8x2xf32>, vector<2x16xf32>, vector<8x16xf32> -> vector<8x16xf32>
    %95 = arith.index_cast %c4_i32 : i32 to index
    %c0_54 = arith.constant 0 : index
    %c0_55 = arith.constant 0 : index
    %96 = vector.load %arg2[%95, %c0_54, %c0_55] : memref<8x8x2xf32, #tpu.memory_space<vmem>>, vector<1x8x2xf32>
    %97 = vector.shape_cast %96 : vector<1x8x2xf32> to vector<8x2xf32>
    %cst_56 = arith.constant dense<0.000000e+00> : vector<8x16xf32>
    %98 = tpu.matmul %97, %1, %cst_56 {dimension_numbers = #tpu.dot_dimension_numbers<[1], [0], [0], [1], [0, 0, 1, 1], [], []>} : vector<8x2xf32>, vector<2x16xf32>, vector<8x16xf32> -> vector<8x16xf32>
    %99 = arith.addf %94, %98 : vector<8x16xf32>
    %cst_57 = arith.constant dense<0.000000e+00> : vector<8x16xf32>
    %100 = tpu.matmul %83, %2, %cst_57 {dimension_numbers = #tpu.dot_dimension_numbers<[1], [0], [0], [1], [0, 0, 1, 1], [], []>} : vector<8x16xf32>, vector<16x16xf32>, vector<8x16xf32> -> vector<8x16xf32>
    %101 = arith.addf %99, %100 : vector<8x16xf32>
    %102 = vector.broadcast %3 : vector<1x16xf32> to vector<8x16xf32>
    %103 = arith.addf %101, %102 : vector<8x16xf32>
    %104 = math.tanh %103 : vector<8x16xf32>
    %cst_58 = arith.constant dense<0.000000e+00> : vector<8x2xf32>
    %105 = tpu.matmul %104, %4, %cst_58 {dimension_numbers = #tpu.dot_dimension_numbers<[1], [0], [0], [1], [0, 0, 1, 1], [], []>} : vector<8x16xf32>, vector<16x2xf32>, vector<8x2xf32> -> vector<8x2xf32>
    %106 = vector.broadcast %5 : vector<1x2xf32> to vector<8x2xf32>
    %107 = arith.addf %105, %106 : vector<8x2xf32>
    %108 = arith.index_cast %c4_i32 : i32 to index
    %c0_59 = arith.constant 0 : index
    %c0_60 = arith.constant 0 : index
    %109 = vector.load %arg9[%108, %c0_59, %c0_60] : memref<8x8x2xf32, #tpu.memory_space<vmem>>, vector<1x8x2xf32>
    %110 = vector.shape_cast %109 : vector<1x8x2xf32> to vector<8x2xf32>
    %111 = vector.shape_cast %107 : vector<8x2xf32> to vector<1x8x2xf32>
    tpu.vector_store %arg9[%108, %c0_59, %c0_60], %111 {strides = array<i32>} : memref<8x8x2xf32, #tpu.memory_space<vmem>>, vector<1x8x2xf32>,
    %c5_i32 = arith.constant 5 : i32
    %112 = arith.index_cast %c5_i32 : i32 to index
    %c0_61 = arith.constant 0 : index
    %c0_62 = arith.constant 0 : index
    %113 = vector.load %arg1[%112, %c0_61, %c0_62] : memref<8x8x2xf32, #tpu.memory_space<vmem>>, vector<1x8x2xf32>
    %114 = vector.shape_cast %113 : vector<1x8x2xf32> to vector<8x2xf32>
    %cst_63 = arith.constant dense<0.000000e+00> : vector<8x16xf32>
    %115 = tpu.matmul %114, %0, %cst_63 {dimension_numbers = #tpu.dot_dimension_numbers<[1], [0], [0], [1], [0, 0, 1, 1], [], []>} : vector<8x2xf32>, vector<2x16xf32>, vector<8x16xf32> -> vector<8x16xf32>
    %116 = arith.index_cast %c5_i32 : i32 to index
    %c0_64 = arith.constant 0 : index
    %c0_65 = arith.constant 0 : index
    %117 = vector.load %arg2[%116, %c0_64, %c0_65] : memref<8x8x2xf32, #tpu.memory_space<vmem>>, vector<1x8x2xf32>
    %118 = vector.shape_cast %117 : vector<1x8x2xf32> to vector<8x2xf32>
    %cst_66 = arith.constant dense<0.000000e+00> : vector<8x16xf32>
    %119 = tpu.matmul %118, %1, %cst_66 {dimension_numbers = #tpu.dot_dimension_numbers<[1], [0], [0], [1], [0, 0, 1, 1], [], []>} : vector<8x2xf32>, vector<2x16xf32>, vector<8x16xf32> -> vector<8x16xf32>
    %120 = arith.addf %115, %119 : vector<8x16xf32>
    %cst_67 = arith.constant dense<0.000000e+00> : vector<8x16xf32>
    %121 = tpu.matmul %104, %2, %cst_67 {dimension_numbers = #tpu.dot_dimension_numbers<[1], [0], [0], [1], [0, 0, 1, 1], [], []>} : vector<8x16xf32>, vector<16x16xf32>, vector<8x16xf32> -> vector<8x16xf32>
    %122 = arith.addf %120, %121 : vector<8x16xf32>
    %123 = vector.broadcast %3 : vector<1x16xf32> to vector<8x16xf32>
    %124 = arith.addf %122, %123 : vector<8x16xf32>
    %125 = math.tanh %124 : vector<8x16xf32>
    %cst_68 = arith.constant dense<0.000000e+00> : vector<8x2xf32>
    %126 = tpu.matmul %125, %4, %cst_68 {dimension_numbers = #tpu.dot_dimension_numbers<[1], [0], [0], [1], [0, 0, 1, 1], [], []>} : vector<8x16xf32>, vector<16x2xf32>, vector<8x2xf32> -> vector<8x2xf32>
    %127 = vector.broadcast %5 : vector<1x2xf32> to vector<8x2xf32>
    %128 = arith.addf %126, %127 : vector<8x2xf32>
    %129 = arith.index_cast %c5_i32 : i32 to index
    %c0_69 = arith.constant 0 : index
    %c0_70 = arith.constant 0 : index
    %130 = vector.load %arg9[%129, %c0_69, %c0_70] : memref<8x8x2xf32, #tpu.memory_space<vmem>>, vector<1x8x2xf32>
    %131 = vector.shape_cast %130 : vector<1x8x2xf32> to vector<8x2xf32>
    %132 = vector.shape_cast %128 : vector<8x2xf32> to vector<1x8x2xf32>
    tpu.vector_store %arg9[%129, %c0_69, %c0_70], %132 {strides = array<i32>} : memref<8x8x2xf32, #tpu.memory_space<vmem>>, vector<1x8x2xf32>,
    %c6_i32 = arith.constant 6 : i32
    %133 = arith.index_cast %c6_i32 : i32 to index
    %c0_71 = arith.constant 0 : index
    %c0_72 = arith.constant 0 : index
    %134 = vector.load %arg1[%133, %c0_71, %c0_72] : memref<8x8x2xf32, #tpu.memory_space<vmem>>, vector<1x8x2xf32>
    %135 = vector.shape_cast %134 : vector<1x8x2xf32> to vector<8x2xf32>
    %cst_73 = arith.constant dense<0.000000e+00> : vector<8x16xf32>
    %136 = tpu.matmul %135, %0, %cst_73 {dimension_numbers = #tpu.dot_dimension_numbers<[1], [0], [0], [1], [0, 0, 1, 1], [], []>} : vector<8x2xf32>, vector<2x16xf32>, vector<8x16xf32> -> vector<8x16xf32>
    %137 = arith.index_cast %c6_i32 : i32 to index
    %c0_74 = arith.constant 0 : index
    %c0_75 = arith.constant 0 : index
    %138 = vector.load %arg2[%137, %c0_74, %c0_75] : memref<8x8x2xf32, #tpu.memory_space<vmem>>, vector<1x8x2xf32>
    %139 = vector.shape_cast %138 : vector<1x8x2xf32> to vector<8x2xf32>
    %cst_76 = arith.constant dense<0.000000e+00> : vector<8x16xf32>
    %140 = tpu.matmul %139, %1, %cst_76 {dimension_numbers = #tpu.dot_dimension_numbers<[1], [0], [0], [1], [0, 0, 1, 1], [], []>} : vector<8x2xf32>, vector<2x16xf32>, vector<8x16xf32> -> vector<8x16xf32>
    %141 = arith.addf %136, %140 : vector<8x16xf32>
    %cst_77 = arith.constant dense<0.000000e+00> : vector<8x16xf32>
    %142 = tpu.matmul %125, %2, %cst_77 {dimension_numbers = #tpu.dot_dimension_numbers<[1], [0], [0], [1], [0, 0, 1, 1], [], []>} : vector<8x16xf32>, vector<16x16xf32>, vector<8x16xf32> -> vector<8x16xf32>
    %143 = arith.addf %141, %142 : vector<8x16xf32>
    %144 = vector.broadcast %3 : vector<1x16xf32> to vector<8x16xf32>
    %145 = arith.addf %143, %144 : vector<8x16xf32>
    %146 = math.tanh %145 : vector<8x16xf32>
    %cst_78 = arith.constant dense<0.000000e+00> : vector<8x2xf32>
    %147 = tpu.matmul %146, %4, %cst_78 {dimension_numbers = #tpu.dot_dimension_numbers<[1], [0], [0], [1], [0, 0, 1, 1], [], []>} : vector<8x16xf32>, vector<16x2xf32>, vector<8x2xf32> -> vector<8x2xf32>
    %148 = vector.broadcast %5 : vector<1x2xf32> to vector<8x2xf32>
    %149 = arith.addf %147, %148 : vector<8x2xf32>
    %150 = arith.index_cast %c6_i32 : i32 to index
    %c0_79 = arith.constant 0 : index
    %c0_80 = arith.constant 0 : index
    %151 = vector.load %arg9[%150, %c0_79, %c0_80] : memref<8x8x2xf32, #tpu.memory_space<vmem>>, vector<1x8x2xf32>
    %152 = vector.shape_cast %151 : vector<1x8x2xf32> to vector<8x2xf32>
    %153 = vector.shape_cast %149 : vector<8x2xf32> to vector<1x8x2xf32>
    tpu.vector_store %arg9[%150, %c0_79, %c0_80], %153 {strides = array<i32>} : memref<8x8x2xf32, #tpu.memory_space<vmem>>, vector<1x8x2xf32>,
    %c7_i32 = arith.constant 7 : i32
    %154 = arith.index_cast %c7_i32 : i32 to index
    %c0_81 = arith.constant 0 : index
    %c0_82 = arith.constant 0 : index
    %155 = vector.load %arg1[%154, %c0_81, %c0_82] : memref<8x8x2xf32, #tpu.memory_space<vmem>>, vector<1x8x2xf32>
    %156 = vector.shape_cast %155 : vector<1x8x2xf32> to vector<8x2xf32>
    %cst_83 = arith.constant dense<0.000000e+00> : vector<8x16xf32>
    %157 = tpu.matmul %156, %0, %cst_83 {dimension_numbers = #tpu.dot_dimension_numbers<[1], [0], [0], [1], [0, 0, 1, 1], [], []>} : vector<8x2xf32>, vector<2x16xf32>, vector<8x16xf32> -> vector<8x16xf32>
    %158 = arith.index_cast %c7_i32 : i32 to index
    %c0_84 = arith.constant 0 : index
    %c0_85 = arith.constant 0 : index
    %159 = vector.load %arg2[%158, %c0_84, %c0_85] : memref<8x8x2xf32, #tpu.memory_space<vmem>>, vector<1x8x2xf32>
    %160 = vector.shape_cast %159 : vector<1x8x2xf32> to vector<8x2xf32>
    %cst_86 = arith.constant dense<0.000000e+00> : vector<8x16xf32>
    %161 = tpu.matmul %160, %1, %cst_86 {dimension_numbers = #tpu.dot_dimension_numbers<[1], [0], [0], [1], [0, 0, 1, 1], [], []>} : vector<8x2xf32>, vector<2x16xf32>, vector<8x16xf32> -> vector<8x16xf32>
    %162 = arith.addf %157, %161 : vector<8x16xf32>
    %cst_87 = arith.constant dense<0.000000e+00> : vector<8x16xf32>
    %163 = tpu.matmul %146, %2, %cst_87 {dimension_numbers = #tpu.dot_dimension_numbers<[1], [0], [0], [1], [0, 0, 1, 1], [], []>} : vector<8x16xf32>, vector<16x16xf32>, vector<8x16xf32> -> vector<8x16xf32>
    %164 = arith.addf %162, %163 : vector<8x16xf32>
    %165 = vector.broadcast %3 : vector<1x16xf32> to vector<8x16xf32>
    %166 = arith.addf %164, %165 : vector<8x16xf32>
    %167 = math.tanh %166 : vector<8x16xf32>
    %cst_88 = arith.constant dense<0.000000e+00> : vector<8x2xf32>
    %168 = tpu.matmul %167, %4, %cst_88 {dimension_numbers = #tpu.dot_dimension_numbers<[1], [0], [0], [1], [0, 0, 1, 1], [], []>} : vector<8x16xf32>, vector<16x2xf32>, vector<8x2xf32> -> vector<8x2xf32>
    %169 = vector.broadcast %5 : vector<1x2xf32> to vector<8x2xf32>
    %170 = arith.addf %168, %169 : vector<8x2xf32>
    %171 = arith.index_cast %c7_i32 : i32 to index
    %c0_89 = arith.constant 0 : index
    %c0_90 = arith.constant 0 : index
    %172 = vector.load %arg9[%171, %c0_89, %c0_90] : memref<8x8x2xf32, #tpu.memory_space<vmem>>, vector<1x8x2xf32>
    %173 = vector.shape_cast %172 : vector<1x8x2xf32> to vector<8x2xf32>
    %174 = vector.shape_cast %170 : vector<8x2xf32> to vector<1x8x2xf32>
    tpu.vector_store %arg9[%171, %c0_89, %c0_90], %174 {strides = array<i32>} : memref<8x8x2xf32, #tpu.memory_space<vmem>>, vector<1x8x2xf32>,
    %c8_i32 = arith.constant 8 : i32
    return
  }
  func.func @transform_0(%arg0: i32) -> (i32, i32, i32) {
    %c0_i32 = arith.constant 0 : i32
    %c0_i32_0 = arith.constant 0 : i32
    %c0_i32_1 = arith.constant 0 : i32
    return %c0_i32, %arg0, %c0_i32_0 : i32, i32, i32
  }
  func.func @transform_1(%arg0: i32) -> (i32, i32, i32) {
    %c0_i32 = arith.constant 0 : i32
    %c0_i32_0 = arith.constant 0 : i32
    %c0_i32_1 = arith.constant 0 : i32
    return %c0_i32, %arg0, %c0_i32_0 : i32, i32, i32
  }
  func.func @transform_2(%arg0: i32) -> (i32, i32) {
    %c0_i32 = arith.constant 0 : i32
    %c0_i32_0 = arith.constant 0 : i32
    %c0_i32_1 = arith.constant 0 : i32
    return %c0_i32, %c0_i32_0 : i32, i32
  }
  func.func @transform_3(%arg0: i32) -> (i32, i32) {
    %c0_i32 = arith.constant 0 : i32
    %c0_i32_0 = arith.constant 0 : i32
    %c0_i32_1 = arith.constant 0 : i32
    return %c0_i32, %c0_i32_0 : i32, i32
  }
  func.func @transform_4(%arg0: i32) -> (i32, i32) {
    %c0_i32 = arith.constant 0 : i32
    %c0_i32_0 = arith.constant 0 : i32
    %c0_i32_1 = arith.constant 0 : i32
    return %c0_i32, %c0_i32_0 : i32, i32
  }
  func.func @transform_5(%arg0: i32) -> (i32, i32) {
    %c0_i32 = arith.constant 0 : i32
    %c0_i32_0 = arith.constant 0 : i32
    %c0_i32_1 = arith.constant 0 : i32
    return %c0_i32, %c0_i32_0 : i32, i32
  }
  func.func @transform_6(%arg0: i32) -> (i32, i32) {
    %c0_i32 = arith.constant 0 : i32
    %c0_i32_0 = arith.constant 0 : i32
    %c0_i32_1 = arith.constant 0 : i32
    return %c0_i32, %c0_i32_0 : i32, i32
  }
  func.func @transform_7(%arg0: i32) -> (i32, i32) {
    %c0_i32 = arith.constant 0 : i32
    %c0_i32_0 = arith.constant 0 : i32
    %c0_i32_1 = arith.constant 0 : i32
    return %c0_i32, %c0_i32_0 : i32, i32
  }
  func.func @transform_8(%arg0: i32) -> (i32, i32, i32) {
    %c0_i32 = arith.constant 0 : i32
    %c0_i32_0 = arith.constant 0 : i32
    %c0_i32_1 = arith.constant 0 : i32
    return %c0_i32, %arg0, %c0_i32_0 : i32, i32, i32
  }
}

</mosaic_0001>

<llo_original>
// kernel: rnn_sequence_model.1
$region0: #{rnn_sequence_model.1}
  #allocation0 [shape = 'u32[]', space=smem, size = 0x4, offset = 0x4, fixed_abs, tag = 'smem constant byte address 0x4 - core index']
  #allocation1 [shape = 'u32[144,128]{1,0:T(1,128)}', space=vmem, size = 0x12000, scoped, tag = 'internal scratch']
  %s0 = inlined_call_operand.vmem [shape: f32[8,8,2], index: 0, kind: input, shape index: {}]
  %s1 = inlined_call_operand.vmem [shape: f32[8,8,2], index: 1, kind: input, shape index: {}]
  %s2 = inlined_call_operand.vmem [shape: f32[2,16], index: 2, kind: input, shape index: {}]
  %s3 = inlined_call_operand.vmem [shape: f32[2,16], index: 3, kind: input, shape index: {}]
  %s4 = inlined_call_operand.vmem [shape: f32[16,16], index: 4, kind: input, shape index: {}]
  %s5 = inlined_call_operand.vmem [shape: f32[1,16], index: 5, kind: input, shape index: {}]
  %s6 = inlined_call_operand.vmem [shape: f32[16,2], index: 6, kind: input, shape index: {}]
  %s7 = inlined_call_operand.vmem [shape: f32[1,2], index: 7, kind: input, shape index: {}]
  %s8 = inlined_call_operand.vmem [shape: f32[8,8,2], index: 8, kind: output, shape index: {}]
  %s9 = sld [smem:[#allocation0]]
  $region42: #{rnn_sequence_model.1} parent=0
    _
  %s11 = ssub.s32 1, %s9
  %s12 = scalar_select 0, %s11, %s9
  // Predicated region
  $region2: #{rnn_sequence_model.1} parent=0 // pred_check
    _
  $region3: #{rnn_sequence_model.1} parent=0 // pred_check_branch
    %14 = sbr.rel (0) target = $region5
  $region4: #{rnn_sequence_model.1} parent=0 // pred_region
    _
  $region5: #{rnn_sequence_model.1} parent=0 // pred_fallthru
    _
  // Predicated region
  $region6: #{rnn_sequence_model.1} parent=0 // pred_check
    _
  $region7: #{rnn_sequence_model.1} parent=0 // pred_check_branch
    %16 = sbr.rel (0) target = $region9
  $region8: #{rnn_sequence_model.1} parent=0 // pred_region
    _
  $region9: #{rnn_sequence_model.1} parent=0 // pred_fallthru
    _
  // Predicated region
  $region10: #{rnn_sequence_model.1} parent=0 // pred_check
    _
  $region11: #{rnn_sequence_model.1} parent=0 // pred_check_branch
    %18 = sbr.rel (0) target = $region13
  $region12: #{rnn_sequence_model.1} parent=0 // pred_region
    _
  $region13: #{rnn_sequence_model.1} parent=0 // pred_fallthru
    _
  // Predicated region
  $region14: #{rnn_sequence_model.1} parent=0 // pred_check
    _
  $region15: #{rnn_sequence_model.1} parent=0 // pred_check_branch
    %20 = sbr.rel (0) target = $region17
  $region16: #{rnn_sequence_model.1} parent=0 // pred_region
    _
  $region17: #{rnn_sequence_model.1} parent=0 // pred_fallthru
    _
  // Predicated region
  $region18: #{rnn_sequence_model.1} parent=0 // pred_check
    _
  $region19: #{rnn_sequence_model.1} parent=0 // pred_check_branch
    %22 = sbr.rel (0) target = $region21
  $region20: #{rnn_sequence_model.1} parent=0 // pred_region
    _
  $region21: #{rnn_sequence_model.1} parent=0 // pred_fallthru
    _
  // Predicated region
  $region22: #{rnn_sequence_model.1} parent=0 // pred_check
    _
  $region23: #{rnn_sequence_model.1} parent=0 // pred_check_branch
    %24 = sbr.rel (0) target = $region25
  $region24: #{rnn_sequence_model.1} parent=0 // pred_region
    _
  $region25: #{rnn_sequence_model.1} parent=0 // pred_fallthru
    _
  // Predicated region
  $region26: #{rnn_sequence_model.1} parent=0 // pred_check
    _
  $region27: #{rnn_sequence_model.1} parent=0 // pred_check_branch
    %26 = sbr.rel (0) target = $region29
  $region28: #{rnn_sequence_model.1} parent=0 // pred_region
    _
  $region29: #{rnn_sequence_model.1} parent=0 // pred_fallthru
    _
  // Predicated region
  $region30: #{rnn_sequence_model.1} parent=0 // pred_check
    _
  $region31: #{rnn_sequence_model.1} parent=0 // pred_check_branch
    %28 = sbr.rel (0) target = $region33
  $region32: #{rnn_sequence_model.1} parent=0 // pred_region
    _
  $region33: #{rnn_sequence_model.1} parent=0 // pred_fallthru
    _
  %v29 = vld [vmem:[%s2] sm:$0x3]
  %v30 = vld [vmem:[%s3] sm:$0x3]
  %v31 = vld [vmem:[%s4] sm:$0xff]
  %v32 = vld [vmem:[%s4 + $0x8] sm:$0xff]
  %v33 = vld [vmem:[%s5] sm:$0x1]
  %v34 = vld [vmem:[%s6] sm:$0xff]
  %v35 = vld [vmem:[%s6 + $0x8] sm:$0xff]
  %v36 = vld [vmem:[%s7] sm:$0x1]
  %v37 = vld [vmem:[%s0] sm:$0xff]
  %v38 = vld [vmem:[%s1] sm:$0xff]
  %vm39 = vcmask 15360
  %v41 = vsel %vm39, %v38, 0
  %vm43 = vcmask 1041408
  %v45 = vsel %vm43, %v30, 0
  %47 = vmatprep.subr.mxu0 0.0
  %48 = vmatpush1.msra.mxu0 %v45
  %49 = vmatprep.subr.mxu0 0.0
  %50 = vmatpush1.msra.mxu0 0.0
  %51 = vmatprep.subr.mxu0 0.0
  %52 = vmatpush1.msra.mxu0 0.0
  %53 = vmatprep.subr.mxu0 0.0
  %54 = vmatpush1.msra.mxu0 0.0
  %55 = vmatprep.subr.mxu0 0.0
  %56 = vmatpush1.msra.mxu0 0.0
  %57 = vmatprep.subr.mxu0 0.0
  %58 = vmatpush1.msra.mxu0 0.0
  %59 = vmatprep.subr.mxu0 0.0
  %60 = vmatpush1.msra.mxu0 0.0
  %61 = vmatprep.subr.mxu0 0.0
  %62 = vmatpush1.msra.mxu0 0.0
  %63 = vmatprep.subr.mxu0 0.0
  %64 = vmatpush1.msra.mxu0 0.0
  %65 = vmatprep.subr.mxu0 0.0
  %66 = vmatpush1.msra.mxu0 0.0
  %67 = vmatprep.subr.mxu0 0.0
  %68 = vmatpush1.msra.mxu0 0.0
  %69 = vmatprep.subr.mxu0 0.0
  %70 = vmatpush1.msra.mxu0 0.0
  %71 = vmatprep.subr.mxu0 0.0
  %72 = vmatpush1.msra.mxu0 0.0
  %73 = vmatprep.subr.mxu0 0.0
  %74 = vmatpush1.msra.mxu0 0.0
  %75 = vmatprep.subr.mxu0 0.0
  %76 = vmatpush1.msra.mxu0 0.0
  %77 = vmatprep.subr.mxu0 0.0
  %78 = vmatpush1.msra.mxu0 0.0
  %79 = vmatprep.subr.mxu0 0.0
  %80 = vmatpush1.msra.mxu0 0.0
  %81 = vmatprep.subr.mxu0 0.0
  %82 = vmatpush1.msra.mxu0 0.0
  %83 = vmatprep.subr.mxu0 0.0
  %84 = vmatpush1.msra.mxu0 0.0
  %85 = vmatprep.subr.mxu0 0.0
  %86 = vmatpush1.msra.mxu0 0.0
  %87 = vmatprep.subr.mxu0 0.0
  %88 = vmatpush1.msra.mxu0 0.0
  %89 = vmatprep.subr.mxu0 0.0
  %90 = vmatpush1.msra.mxu0 0.0
  %91 = vmatprep.subr.mxu0 0.0
  %92 = vmatpush1.msra.mxu0 0.0
  %93 = vmatprep.subr.mxu0 0.0
  %94 = vmatpush1.msra.mxu0 0.0
  %95 = vmatprep.subr.mxu0 0.0
  %96 = vmatpush1.msra.mxu0 0.0
  %97 = vmatprep.subr.mxu0 0.0
  %98 = vmatpush1.msra.mxu0 0.0
  %99 = vmatprep.subr.mxu0 0.0
  %100 = vmatpush1.msra.mxu0 0.0
  %101 = vmatprep.subr.mxu0 0.0
  %102 = vmatpush1.msra.mxu0 0.0
  %103 = vmatprep.subr.mxu0 0.0
  %104 = vmatpush1.msra.mxu0 0.0
  %105 = vmatprep.subr.mxu0 0.0
  %106 = vmatpush1.msra.mxu0 0.0
  %107 = vmatprep.subr.mxu0 0.0
  %108 = vmatpush1.msra.mxu0 0.0
  %109 = vmatprep.subr.mxu0 0.0
  %110 = vmatpush1.msra.mxu0 0.0
  %111 = vmatprep.mubr.f32.mxu0 0.0
  %112 = vmatmul.mubr.f32.gmra.mrb[0].mxu0 %v41
  %v113 = vpop.f32.mrb[0].mxu0
  %v114 = vadd.f32 0.0, %v113
  %v115 = vpop.f32.mrb[0].mxu0
  %116 = vdwg.mxu0
  %v118 = vsel %vm39, %v37, 0
  %v121 = vsel %vm43, %v29, 0
  %123 = vmatprep.subr.mxu0 0.0
  %124 = vmatpush1.msra.mxu0 %v121
  %125 = vmatprep.subr.mxu0 0.0
  %126 = vmatpush1.msra.mxu0 0.0
  %127 = vmatprep.subr.mxu0 0.0
  %128 = vmatpush1.msra.mxu0 0.0
  %129 = vmatprep.subr.mxu0 0.0
  %130 = vmatpush1.msra.mxu0 0.0
  %131 = vmatprep.subr.mxu0 0.0
  %132 = vmatpush1.msra.mxu0 0.0
  %133 = vmatprep.subr.mxu0 0.0
  %134 = vmatpush1.msra.mxu0 0.0
  %135 = vmatprep.subr.mxu0 0.0
  %136 = vmatpush1.msra.mxu0 0.0
  %137 = vmatprep.subr.mxu0 0.0
  %138 = vmatpush1.msra.mxu0 0.0
  %139 = vmatprep.subr.mxu0 0.0
  %140 = vmatpush1.msra.mxu0 0.0
  %141 = vmatprep.subr.mxu0 0.0
  %142 = vmatpush1.msra.mxu0 0.0
  %143 = vmatprep.subr.mxu0 0.0
  %144 = vmatpush1.msra.mxu0 0.0
  %145 = vmatprep.subr.mxu0 0.0
  %146 = vmatpush1.msra.mxu0 0.0
  %147 = vmatprep.subr.mxu0 0.0
  %148 = vmatpush1.msra.mxu0 0.0
  %149 = vmatprep.subr.mxu0 0.0
  %150 = vmatpush1.msra.mxu0 0.0
  %151 = vmatprep.subr.mxu0 0.0
  %152 = vmatpush1.msra.mxu0 0.0
  %153 = vmatprep.subr.mxu0 0.0
  %154 = vmatpush1.msra.mxu0 0.0
  %155 = vmatprep.subr.mxu0 0.0
  %156 = vmatpush1.msra.mxu0 0.0
  %157 = vmatprep.subr.mxu0 0.0
  %158 = vmatpush1.msra.mxu0 0.0
  %159 = vmatprep.subr.mxu0 0.0
  %160 = vmatpush1.msra.mxu0 0.0
  %161 = vmatprep.subr.mxu0 0.0
  %162 = vmatpush1.msra.mxu0 0.0
  %163 = vmatprep.subr.mxu0 0.0
  %164 = vmatpush1.msra.mxu0 0.0
  %165 = vmatprep.subr.mxu0 0.0
  %166 = vmatpush1.msra.mxu0 0.0
  %167 = vmatprep.subr.mxu0 0.0
  %168 = vmatpush1.msra.mxu0 0.0
  %169 = vmatprep.subr.mxu0 0.0
  %170 = vmatpush1.msra.mxu0 0.0
  %171 = vmatprep.subr.mxu0 0.0
  %172 = vmatpush1.msra.mxu0 0.0
  %173 = vmatprep.subr.mxu0 0.0
  %174 = vmatpush1.msra.mxu0 0.0
  %175 = vmatprep.subr.mxu0 0.0
  %176 = vmatpush1.msra.mxu0 0.0
  %177 = vmatprep.subr.mxu0 0.0
  %178 = vmatpush1.msra.mxu0 0.0
  %179 = vmatprep.subr.mxu0 0.0
  %180 = vmatpush1.msra.mxu0 0.0
  %181 = vmatprep.subr.mxu0 0.0
  %182 = vmatpush1.msra.mxu0 0.0
  %183 = vmatprep.subr.mxu0 0.0
  %184 = vmatpush1.msra.mxu0 0.0
  %185 = vmatprep.subr.mxu0 0.0
  %186 = vmatpush1.msra.mxu0 0.0
  %187 = vmatprep.mubr.f32.mxu0 0.0
  %188 = vmatmul.mubr.f32.gmra.mrb[0].mxu0 %v118
  %v189 = vpop.f32.mrb[0].mxu0
  %v190 = vadd.f32 %v114, %v189
  %v191 = vpop.f32.mrb[0].mxu0
  %192 = vdwg.mxu0
  %vm193 = vcmask 130048
  %v195 = vsel %vm193, 0.0, 0
  %197 = vmatprep.subr.mxu0 0.0
  %198 = vmatpush1.msra.mxu0 %v31
  %199 = vmatprep.subr.mxu0 0.0
  %200 = vmatpush1.msra.mxu0 %v32
  %201 = vmatprep.subr.mxu0 0.0
  %202 = vmatpush1.msra.mxu0 0.0
  %203 = vmatprep.subr.mxu0 0.0
  %204 = vmatpush1.msra.mxu0 0.0
  %205 = vmatprep.subr.mxu0 0.0
  %206 = vmatpush1.msra.mxu0 0.0
  %207 = vmatprep.subr.mxu0 0.0
  %208 = vmatpush1.msra.mxu0 0.0
  %209 = vmatprep.subr.mxu0 0.0
  %210 = vmatpush1.msra.mxu0 0.0
  %211 = vmatprep.subr.mxu0 0.0
  %212 = vmatpush1.msra.mxu0 0.0
  %213 = vmatprep.subr.mxu0 0.0
  %214 = vmatpush1.msra.mxu0 0.0
  %215 = vmatprep.subr.mxu0 0.0
  %216 = vmatpush1.msra.mxu0 0.0
  %217 = vmatprep.subr.mxu0 0.0
  %218 = vmatpush1.msra.mxu0 0.0
  %219 = vmatprep.subr.mxu0 0.0
  %220 = vmatpush1.msra.mxu0 0.0
  %221 = vmatprep.subr.mxu0 0.0
  %222 = vmatpush1.msra.mxu0 0.0
  %223 = vmatprep.subr.mxu0 0.0
  %224 = vmatpush1.msra.mxu0 0.0
  %225 = vmatprep.subr.mxu0 0.0
  %226 = vmatpush1.msra.mxu0 0.0
  %227 = vmatprep.subr.mxu0 0.0
  %228 = vmatpush1.msra.mxu0 0.0
  %229 = vmatprep.subr.mxu0 0.0
  %230 = vmatpush1.msra.mxu0 0.0
  %231 = vmatprep.subr.mxu0 0.0
  %232 = vmatpush1.msra.mxu0 0.0
  %233 = vmatprep.subr.mxu0 0.0
  %234 = vmatpush1.msra.mxu0 0.0
  %235 = vmatprep.subr.mxu0 0.0
  %236 = vmatpush1.msra.mxu0 0.0
  %237 = vmatprep.subr.mxu0 0.0
  %238 = vmatpush1.msra.mxu0 0.0
  %239 = vmatprep.subr.mxu0 0.0
  %240 = vmatpush1.msra.mxu0 0.0
  %241 = vmatprep.subr.mxu0 0.0
  %242 = vmatpush1.msra.mxu0 0.0
  %243 = vmatprep.subr.mxu0 0.0
  %244 = vmatpush1.msra.mxu0 0.0
  %245 = vmatprep.subr.mxu0 0.0
  %246 = vmatpush1.msra.mxu0 0.0
  %247 = vmatprep.subr.mxu0 0.0
  %248 = vmatpush1.msra.mxu0 0.0
  %249 = vmatprep.subr.mxu0 0.0
  %250 = vmatpush1.msra.mxu0 0.0
  %251 = vmatprep.subr.mxu0 0.0
  %252 = vmatpush1.msra.mxu0 0.0
  %253 = vmatprep.subr.mxu0 0.0
  %254 = vmatpush1.msra.mxu0 0.0
  %255 = vmatprep.subr.mxu0 0.0
  %256 = vmatpush1.msra.mxu0 0.0
  %257 = vmatprep.subr.mxu0 0.0
  %258 = vmatpush1.msra.mxu0 0.0
  %259 = vmatprep.subr.mxu0 0.0
  %260 = vmatpush1.msra.mxu0 0.0
  %261 = vmatprep.mubr.f32.mxu0 0.0
  %262 = vmatmul.mubr.f32.gmra.mrb[0].mxu0 %v195
  %v263 = vpop.f32.mrb[0].mxu0
  %v264 = vadd.f32 0.0, %v263
  %v265 = vpop.f32.mrb[0].mxu0
  %266 = vdwg.mxu0
  %v267 = vadd.f32 %v190, %v264
  %v269 = vlaneseq
  %v270 = vshrl.u32 %v269, 7
  %v271 = vsub.s32 0, %v270
  %v272 = vrot.slane %v33, %v271
  %v274 = vadd.f32 %v267, %v272
  %v275 = vtanh.pop %v274
  %v277 = vlaneseq
  %v278 = vshrl.u32 %v277, 7
  %v279 = vsub.s32 0, %v278
  %v280 = vrot.slane %v36, %v279
  %v283 = vsel %vm193, %v275, 0
  %285 = vmatprep.subr.mxu0 0.0
  %286 = vmatpush1.msra.mxu0 %v34
  %287 = vmatprep.subr.mxu0 0.0
  %288 = vmatpush1.msra.mxu0 %v35
  %289 = vmatprep.subr.mxu0 0.0
  %290 = vmatpush1.msra.mxu0 0.0
  %291 = vmatprep.subr.mxu0 0.0
  %292 = vmatpush1.msra.mxu0 0.0
  %293 = vmatprep.subr.mxu0 0.0
  %294 = vmatpush1.msra.mxu0 0.0
  %295 = vmatprep.subr.mxu0 0.0
  %296 = vmatpush1.msra.mxu0 0.0
  %297 = vmatprep.subr.mxu0 0.0
  %298 = vmatpush1.msra.mxu0 0.0
  %299 = vmatprep.subr.mxu0 0.0
  %300 = vmatpush1.msra.mxu0 0.0
  %301 = vmatprep.subr.mxu0 0.0
  %302 = vmatpush1.msra.mxu0 0.0
  %303 = vmatprep.subr.mxu0 0.0
  %304 = vmatpush1.msra.mxu0 0.0
  %305 = vmatprep.subr.mxu0 0.0
  %306 = vmatpush1.msra.mxu0 0.0
  %307 = vmatprep.subr.mxu0 0.0
  %308 = vmatpush1.msra.mxu0 0.0
  %309 = vmatprep.subr.mxu0 0.0
  %310 = vmatpush1.msra.mxu0 0.0
  %311 = vmatprep.subr.mxu0 0.0
  %312 = vmatpush1.msra.mxu0 0.0
  %313 = vmatprep.subr.mxu0 0.0
  %314 = vmatpush1.msra.mxu0 0.0
  %315 = vmatprep.subr.mxu0 0.0
  %316 = vmatpush1.msra.mxu0 0.0
  %317 = vmatprep.subr.mxu0 0.0
  %318 = vmatpush1.msra.mxu0 0.0
  %319 = vmatprep.subr.mxu0 0.0
  %320 = vmatpush1.msra.mxu0 0.0
  %321 = vmatprep.subr.mxu0 0.0
  %322 = vmatpush1.msra.mxu0 0.0
  %323 = vmatprep.subr.mxu0 0.0
  %324 = vmatpush1.msra.mxu0 0.0
  %325 = vmatprep.subr.mxu0 0.0
  %326 = vmatpush1.msra.mxu0 0.0
  %327 = vmatprep.subr.mxu0 0.0
  %328 = vmatpush1.msra.mxu0 0.0
  %329 = vmatprep.subr.mxu0 0.0
  %330 = vmatpush1.msra.mxu0 0.0
  %331 = vmatprep.subr.mxu0 0.0
  %332 = vmatpush1.msra.mxu0 0.0
  %333 = vmatprep.subr.mxu0 0.0
  %334 = vmatpush1.msra.mxu0 0.0
  %335 = vmatprep.subr.mxu0 0.0
  %336 = vmatpush1.msra.mxu0 0.0
  %337 = vmatprep.subr.mxu0 0.0
  %338 = vmatpush1.msra.mxu0 0.0
  %339 = vmatprep.subr.mxu0 0.0
  %340 = vmatpush1.msra.mxu0 0.0
  %341 = vmatprep.subr.mxu0 0.0
  %342 = vmatpush1.msra.mxu0 0.0
  %343 = vmatprep.subr.mxu0 0.0
  %344 = vmatpush1.msra.mxu0 0.0
  %345 = vmatprep.subr.mxu0 0.0
  %346 = vmatpush1.msra.mxu0 0.0
  %347 = vmatprep.subr.mxu0 0.0
  %348 = vmatpush1.msra.mxu0 0.0
  %349 = vmatprep.mubr.f32.mxu0 0.0
  %350 = vmatmul.mubr.f32.gmra.mrb[0].mxu0 %v283
  %v351 = vpop.f32.mrb[0].mxu0
  %v352 = vadd.f32 %v280, %v351
  %v353 = vpop.f32.mrb[0].mxu0
  %354 = vdwg.mxu0
  %355 = vst.msk [vmem:[%s8] sm:$0xff] %vm39, %v352
  %s356 = scalar_lea.vmem %s0, 8
  %v357 = vld [vmem:[%s356] sm:$0xff]
  %s358 = scalar_lea.vmem %s1, 8
  %v359 = vld [vmem:[%s358] sm:$0xff]
  %v361 = vsel %vm39, %v359, 0
  %363 = vmatprep.subr.mxu0 0.0
  %364 = vmatpush1.msra.mxu0 %v45
  %365 = vmatprep.subr.mxu0 0.0
  %366 = vmatpush1.msra.mxu0 0.0
  %367 = vmatprep.subr.mxu0 0.0
  %368 = vmatpush1.msra.mxu0 0.0
  %369 = vmatprep.subr.mxu0 0.0
  %370 = vmatpush1.msra.mxu0 0.0
  %371 = vmatprep.subr.mxu0 0.0
  %372 = vmatpush1.msra.mxu0 0.0
  %373 = vmatprep.subr.mxu0 0.0
  %374 = vmatpush1.msra.mxu0 0.0
  %375 = vmatprep.subr.mxu0 0.0
  %376 = vmatpush1.msra.mxu0 0.0
  %377 = vmatprep.subr.mxu0 0.0
  %378 = vmatpush1.msra.mxu0 0.0
  %379 = vmatprep.subr.mxu0 0.0
  %380 = vmatpush1.msra.mxu0 0.0
  %381 = vmatprep.subr.mxu0 0.0
  %382 = vmatpush1.msra.mxu0 0.0
  %383 = vmatprep.subr.mxu0 0.0
  %384 = vmatpush1.msra.mxu0 0.0
  %385 = vmatprep.subr.mxu0 0.0
  %386 = vmatpush1.msra.mxu0 0.0
  %387 = vmatprep.subr.mxu0 0.0
  %388 = vmatpush1.msra.mxu0 0.0
  %389 = vmatprep.subr.mxu0 0.0
  %390 = vmatpush1.msra.mxu0 0.0
  %391 = vmatprep.subr.mxu0 0.0
  %392 = vmatpush1.msra.mxu0 0.0
  %393 = vmatprep.subr.mxu0 0.0
  %394 = vmatpush1.msra.mxu0 0.0
  %395 = vmatprep.subr.mxu0 0.0
  %396 = vmatpush1.msra.mxu0 0.0
  %397 = vmatprep.subr.mxu0 0.0
  %398 = vmatpush1.msra.mxu0 0.0
  %399 = vmatprep.subr.mxu0 0.0
  %400 = vmatpush1.msra.mxu0 0.0
  %401 = vmatprep.subr.mxu0 0.0
  %402 = vmatpush1.msra.mxu0 0.0
  %403 = vmatprep.subr.mxu0 0.0
  %404 = vmatpush1.msra.mxu0 0.0
  %405 = vmatprep.subr.mxu0 0.0
  %406 = vmatpush1.msra.mxu0 0.0
  %407 = vmatprep.subr.mxu0 0.0
  %408 = vmatpush1.msra.mxu0 0.0
  %409 = vmatprep.subr.mxu0 0.0
  %410 = vmatpush1.msra.mxu0 0.0
  %411 = vmatprep.subr.mxu0 0.0
  %412 = vmatpush1.msra.mxu0 0.0
  %413 = vmatprep.subr.mxu0 0.0
  %414 = vmatpush1.msra.mxu0 0.0
  %415 = vmatprep.subr.mxu0 0.0
  %416 = vmatpush1.msra.mxu0 0.0
  %417 = vmatprep.subr.mxu0 0.0
  %418 = vmatpush1.msra.mxu0 0.0
  %419 = vmatprep.subr.mxu0 0.0
  %420 = vmatpush1.msra.mxu0 0.0
  %421 = vmatprep.subr.mxu0 0.0
  %422 = vmatpush1.msra.mxu0 0.0
  %423 = vmatprep.subr.mxu0 0.0
  %424 = vmatpush1.msra.mxu0 0.0
  %425 = vmatprep.subr.mxu0 0.0
  %426 = vmatpush1.msra.mxu0 0.0
  %427 = vmatprep.mubr.f32.mxu0 0.0
  %428 = vmatmul.mubr.f32.gmra.mrb[0].mxu0 %v361
  %v429 = vpop.f32.mrb[0].mxu0
  %v430 = vadd.f32 0.0, %v429
  %v431 = vpop.f32.mrb[0].mxu0
  %432 = vdwg.mxu0
  %v434 = vsel %vm39, %v357, 0
  %436 = vmatprep.subr.mxu0 0.0
  %437 = vmatpush1.msra.mxu0 %v121
  %438 = vmatprep.subr.mxu0 0.0
  %439 = vmatpush1.msra.mxu0 0.0
  %440 = vmatprep.subr.mxu0 0.0
  %441 = vmatpush1.msra.mxu0 0.0
  %442 = vmatprep.subr.mxu0 0.0
  %443 = vmatpush1.msra.mxu0 0.0
  %444 = vmatprep.subr.mxu0 0.0
  %445 = vmatpush1.msra.mxu0 0.0
  %446 = vmatprep.subr.mxu0 0.0
  %447 = vmatpush1.msra.mxu0 0.0
  %448 = vmatprep.subr.mxu0 0.0
  %449 = vmatpush1.msra.mxu0 0.0
  %450 = vmatprep.subr.mxu0 0.0
  %451 = vmatpush1.msra.mxu0 0.0
  %452 = vmatprep.subr.mxu0 0.0
  %453 = vmatpush1.msra.mxu0 0.0
  %454 = vmatprep.subr.mxu0 0.0
  %455 = vmatpush1.msra.mxu0 0.0
  %456 = vmatprep.subr.mxu0 0.0
  %457 = vmatpush1.msra.mxu0 0.0
  %458 = vmatprep.subr.mxu0 0.0
  %459 = vmatpush1.msra.mxu0 0.0
  %460 = vmatprep.subr.mxu0 0.0
  %461 = vmatpush1.msra.mxu0 0.0
  %462 = vmatprep.subr.mxu0 0.0
  %463 = vmatpush1.msra.mxu0 0.0
  %464 = vmatprep.subr.mxu0 0.0
  %465 = vmatpush1.msra.mxu0 0.0
  %466 = vmatprep.subr.mxu0 0.0
  %467 = vmatpush1.msra.mxu0 0.0
  %468 = vmatprep.subr.mxu0 0.0
  %469 = vmatpush1.msra.mxu0 0.0
  %470 = vmatprep.subr.mxu0 0.0
  %471 = vmatpush1.msra.mxu0 0.0
  %472 = vmatprep.subr.mxu0 0.0
  %473 = vmatpush1.msra.mxu0 0.0
  %474 = vmatprep.subr.mxu0 0.0
  %475 = vmatpush1.msra.mxu0 0.0
  %476 = vmatprep.subr.mxu0 0.0
  %477 = vmatpush1.msra.mxu0 0.0
  %478 = vmatprep.subr.mxu0 0.0
  %479 = vmatpush1.msra.mxu0 0.0
  %480 = vmatprep.subr.mxu0 0.0
  %481 = vmatpush1.msra.mxu0 0.0
  %482 = vmatprep.subr.mxu0 0.0
  %483 = vmatpush1.msra.mxu0 0.0
  %484 = vmatprep.subr.mxu0 0.0
  %485 = vmatpush1.msra.mxu0 0.0
  %486 = vmatprep.subr.mxu0 0.0
  %487 = vmatpush1.msra.mxu0 0.0
  %488 = vmatprep.subr.mxu0 0.0
  %489 = vmatpush1.msra.mxu0 0.0
  %490 = vmatprep.subr.mxu0 0.0
  %491 = vmatpush1.msra.mxu0 0.0
  %492 = vmatprep.subr.mxu0 0.0
  %493 = vmatpush1.msra.mxu0 0.0
  %494 = vmatprep.subr.mxu0 0.0
  %495 = vmatpush1.msra.mxu0 0.0
  %496 = vmatprep.subr.mxu0 0.0
  %497 = vmatpush1.msra.mxu0 0.0
  %498 = vmatprep.subr.mxu0 0.0
  %499 = vmatpush1.msra.mxu0 0.0
  %500 = vmatprep.mubr.f32.mxu0 0.0
  %501 = vmatmul.mubr.f32.gmra.mrb[0].mxu0 %v434
  %v502 = vpop.f32.mrb[0].mxu0
  %v503 = vadd.f32 %v430, %v502
  %v504 = vpop.f32.mrb[0].mxu0
  %505 = vdwg.mxu0
  %506 = vmatprep.subr.mxu0 0.0
  %507 = vmatpush1.msra.mxu0 %v31
  %508 = vmatprep.subr.mxu0 0.0
  %509 = vmatpush1.msra.mxu0 %v32
  %510 = vmatprep.subr.mxu0 0.0
  %511 = vmatpush1.msra.mxu0 0.0
  %512 = vmatprep.subr.mxu0 0.0
  %513 = vmatpush1.msra.mxu0 0.0
  %514 = vmatprep.subr.mxu0 0.0
  %515 = vmatpush1.msra.mxu0 0.0
  %516 = vmatprep.subr.mxu0 0.0
  %517 = vmatpush1.msra.mxu0 0.0
  %518 = vmatprep.subr.mxu0 0.0
  %519 = vmatpush1.msra.mxu0 0.0
  %520 = vmatprep.subr.mxu0 0.0
  %521 = vmatpush1.msra.mxu0 0.0
  %522 = vmatprep.subr.mxu0 0.0
  %523 = vmatpush1.msra.mxu0 0.0
  %524 = vmatprep.subr.mxu0 0.0
  %525 = vmatpush1.msra.mxu0 0.0
  %526 = vmatprep.subr.mxu0 0.0
  %527 = vmatpush1.msra.mxu0 0.0
  %528 = vmatprep.subr.mxu0 0.0
  %529 = vmatpush1.msra.mxu0 0.0
  %530 = vmatprep.subr.mxu0 0.0
  %531 = vmatpush1.msra.mxu0 0.0
  %532 = vmatprep.subr.mxu0 0.0
  %533 = vmatpush1.msra.mxu0 0.0
  %534 = vmatprep.subr.mxu0 0.0
  %535 = vmatpush1.msra.mxu0 0.0
  %536 = vmatprep.subr.mxu0 0.0
  %537 = vmatpush1.msra.mxu0 0.0
  %538 = vmatprep.subr.mxu0 0.0
  %539 = vmatpush1.msra.mxu0 0.0
  %540 = vmatprep.subr.mxu0 0.0
  %541 = vmatpush1.msra.mxu0 0.0
  %542 = vmatprep.subr.mxu0 0.0
  %543 = vmatpush1.msra.mxu0 0.0
  %544 = vmatprep.subr.mxu0 0.0
  %545 = vmatpush1.msra.mxu0 0.0
  %546 = vmatprep.subr.mxu0 0.0
  %547 = vmatpush1.msra.mxu0 0.0
  %548 = vmatprep.subr.mxu0 0.0
  %549 = vmatpush1.msra.mxu0 0.0
  %550 = vmatprep.subr.mxu0 0.0
  %551 = vmatpush1.msra.mxu0 0.0
  %552 = vmatprep.subr.mxu0 0.0
  %553 = vmatpush1.msra.mxu0 0.0
  %554 = vmatprep.subr.mxu0 0.0
  %555 = vmatpush1.msra.mxu0 0.0
  %556 = vmatprep.subr.mxu0 0.0
  %557 = vmatpush1.msra.mxu0 0.0
  %558 = vmatprep.subr.mxu0 0.0
  %559 = vmatpush1.msra.mxu0 0.0
  %560 = vmatprep.subr.mxu0 0.0
  %561 = vmatpush1.msra.mxu0 0.0
  %562 = vmatprep.subr.mxu0 0.0
  %563 = vmatpush1.msra.mxu0 0.0
  %564 = vmatprep.subr.mxu0 0.0
  %565 = vmatpush1.msra.mxu0 0.0
  %566 = vmatprep.subr.mxu0 0.0
  %567 = vmatpush1.msra.mxu0 0.0
  %568 = vmatprep.subr.mxu0 0.0
  %569 = vmatpush1.msra.mxu0 0.0
  %570 = vmatprep.mubr.f32.mxu0 0.0
  %571 = vmatmul.mubr.f32.gmra.mrb[0].mxu0 %v283
  %v572 = vpop.f32.mrb[0].mxu0
  %v573 = vadd.f32 0.0, %v572
  %v574 = vpop.f32.mrb[0].mxu0
  %575 = vdwg.mxu0
  %v576 = vadd.f32 %v503, %v573
  %v577 = vadd.f32 %v576, %v272
  %v578 = vtanh.pop %v577
  %v580 = vsel %vm193, %v578, 0
  %582 = vmatprep.subr.mxu0 0.0
  %583 = vmatpush1.msra.mxu0 %v34
  %584 = vmatprep.subr.mxu0 0.0
  %585 = vmatpush1.msra.mxu0 %v35
  %586 = vmatprep.subr.mxu0 0.0
  %587 = vmatpush1.msra.mxu0 0.0
  %588 = vmatprep.subr.mxu0 0.0
  %589 = vmatpush1.msra.mxu0 0.0
  %590 = vmatprep.subr.mxu0 0.0
  %591 = vmatpush1.msra.mxu0 0.0
  %592 = vmatprep.subr.mxu0 0.0
  %593 = vmatpush1.msra.mxu0 0.0
  %594 = vmatprep.subr.mxu0 0.0
  %595 = vmatpush1.msra.mxu0 0.0
  %596 = vmatprep.subr.mxu0 0.0
  %597 = vmatpush1.msra.mxu0 0.0
  %598 = vmatprep.subr.mxu0 0.0
  %599 = vmatpush1.msra.mxu0 0.0
  %600 = vmatprep.subr.mxu0 0.0
  %601 = vmatpush1.msra.mxu0 0.0
  %602 = vmatprep.subr.mxu0 0.0
  %603 = vmatpush1.msra.mxu0 0.0
  %604 = vmatprep.subr.mxu0 0.0
  %605 = vmatpush1.msra.mxu0 0.0
  %606 = vmatprep.subr.mxu0 0.0
  %607 = vmatpush1.msra.mxu0 0.0
  %608 = vmatprep.subr.mxu0 0.0
  %609 = vmatpush1.msra.mxu0 0.0
  %610 = vmatprep.subr.mxu0 0.0
  %611 = vmatpush1.msra.mxu0 0.0
  %612 = vmatprep.subr.mxu0 0.0
  %613 = vmatpush1.msra.mxu0 0.0
  %614 = vmatprep.subr.mxu0 0.0
  %615 = vmatpush1.msra.mxu0 0.0
  %616 = vmatprep.subr.mxu0 0.0
  %617 = vmatpush1.msra.mxu0 0.0
  %618 = vmatprep.subr.mxu0 0.0
  %619 = vmatpush1.msra.mxu0 0.0
  %620 = vmatprep.subr.mxu0 0.0
  %621 = vmatpush1.msra.mxu0 0.0
  %622 = vmatprep.subr.mxu0 0.0
  %623 = vmatpush1.msra.mxu0 0.0
  %624 = vmatprep.subr.mxu0 0.0
  %625 = vmatpush1.msra.mxu0 0.0
  %626 = vmatprep.subr.mxu0 0.0
  %627 = vmatpush1.msra.mxu0 0.0
  %628 = vmatprep.subr.mxu0 0.0
  %629 = vmatpush1.msra.mxu0 0.0
  %630 = vmatprep.subr.mxu0 0.0
  %631 = vmatpush1.msra.mxu0 0.0
  %632 = vmatprep.subr.mxu0 0.0
  %633 = vmatpush1.msra.mxu0 0.0
  %634 = vmatprep.subr.mxu0 0.0
  %635 = vmatpush1.msra.mxu0 0.0
  %636 = vmatprep.subr.mxu0 0.0
  %637 = vmatpush1.msra.mxu0 0.0
  %638 = vmatprep.subr.mxu0 0.0
  %639 = vmatpush1.msra.mxu0 0.0
  %640 = vmatprep.subr.mxu0 0.0
  %641 = vmatpush1.msra.mxu0 0.0
  %642 = vmatprep.subr.mxu0 0.0
  %643 = vmatpush1.msra.mxu0 0.0
  %644 = vmatprep.subr.mxu0 0.0
  %645 = vmatpush1.msra.mxu0 0.0
  %646 = vmatprep.mubr.f32.mxu0 0.0
  %647 = vmatmul.mubr.f32.gmra.mrb[0].mxu0 %v580
  %v648 = vpop.f32.mrb[0].mxu0
  %v649 = vadd.f32 %v280, %v648
  %v650 = vpop.f32.mrb[0].mxu0
  %651 = vdwg.mxu0
  %s652 = scalar_lea.vmem %s8, 8
  %653 = vst.msk [vmem:[%s652] sm:$0xff] %vm39, %v649
  %s654 = scalar_lea.vmem %s0, 16
  %v655 = vld [vmem:[%s654] sm:$0xff]
  %s656 = scalar_lea.vmem %s1, 16
  %v657 = vld [vmem:[%s656] sm:$0xff]
  %v659 = vsel %vm39, %v657, 0
  %661 = vmatprep.subr.mxu0 0.0
  %662 = vmatpush1.msra.mxu0 %v45
  %663 = vmatprep.subr.mxu0 0.0
  %664 = vmatpush1.msra.mxu0 0.0
  %665 = vmatprep.subr.mxu0 0.0
  %666 = vmatpush1.msra.mxu0 0.0
  %667 = vmatprep.subr.mxu0 0.0
  %668 = vmatpush1.msra.mxu0 0.0
  %669 = vmatprep.subr.mxu0 0.0
  %670 = vmatpush1.msra.mxu0 0.0
  %671 = vmatprep.subr.mxu0 0.0
  %672 = vmatpush1.msra.mxu0 0.0
  %673 = vmatprep.subr.mxu0 0.0
  %674 = vmatpush1.msra.mxu0 0.0
  %675 = vmatprep.subr.mxu0 0.0
  %676 = vmatpush1.msra.mxu0 0.0
  %677 = vmatprep.subr.mxu0 0.0
  %678 = vmatpush1.msra.mxu0 0.0
  %679 = vmatprep.subr.mxu0 0.0
  %680 = vmatpush1.msra.mxu0 0.0
  %681 = vmatprep.subr.mxu0 0.0
  %682 = vmatpush1.msra.mxu0 0.0
  %683 = vmatprep.subr.mxu0 0.0
  %684 = vmatpush1.msra.mxu0 0.0
  %685 = vmatprep.subr.mxu0 0.0
  %686 = vmatpush1.msra.mxu0 0.0
  %687 = vmatprep.subr.mxu0 0.0
  %688 = vmatpush1.msra.mxu0 0.0
  %689 = vmatprep.subr.mxu0 0.0
  %690 = vmatpush1.msra.mxu0 0.0
  %691 = vmatprep.subr.mxu0 0.0
  %692 = vmatpush1.msra.mxu0 0.0
  %693 = vmatprep.subr.mxu0 0.0
  %694 = vmatpush1.msra.mxu0 0.0
  %695 = vmatprep.subr.mxu0 0.0
  %696 = vmatpush1.msra.mxu0 0.0
  %697 = vmatprep.subr.mxu0 0.0
  %698 = vmatpush1.msra.mxu0 0.0
  %699 = vmatprep.subr.mxu0 0.0
  %700 = vmatpush1.msra.mxu0 0.0
  %701 = vmatprep.subr.mxu0 0.0
  %702 = vmatpush1.msra.mxu0 0.0
  %703 = vmatprep.subr.mxu0 0.0
  %704 = vmatpush1.msra.mxu0 0.0
  %705 = vmatprep.subr.mxu0 0.0
  %706 = vmatpush1.msra.mxu0 0.0
  %707 = vmatprep.subr.mxu0 0.0
  %708 = vmatpush1.msra.mxu0 0.0
  %709 = vmatprep.subr.mxu0 0.0
  %710 = vmatpush1.msra.mxu0 0.0
  %711 = vmatprep.subr.mxu0 0.0
  %712 = vmatpush1.msra.mxu0 0.0
  %713 = vmatprep.subr.mxu0 0.0
  %714 = vmatpush1.msra.mxu0 0.0
  %715 = vmatprep.subr.mxu0 0.0
  %716 = vmatpush1.msra.mxu0 0.0
  %717 = vmatprep.subr.mxu0 0.0
  %718 = vmatpush1.msra.mxu0 0.0
  %719 = vmatprep.subr.mxu0 0.0
  %720 = vmatpush1.msra.mxu0 0.0
  %721 = vmatprep.subr.mxu0 0.0
  %722 = vmatpush1.msra.mxu0 0.0
  %723 = vmatprep.subr.mxu0 0.0
  %724 = vmatpush1.msra.mxu0 0.0
  %725 = vmatprep.mubr.f32.mxu0 0.0
  %726 = vmatmul.mubr.f32.gmra.mrb[0].mxu0 %v659
  %v727 = vpop.f32.mrb[0].mxu0
  %v728 = vadd.f32 0.0, %v727
  %v729 = vpop.f32.mrb[0].mxu0
  %730 = vdwg.mxu0
  %v732 = vsel %vm39, %v655, 0
  %734 = vmatprep.subr.mxu0 0.0
  %735 = vmatpush1.msra.mxu0 %v121
  %736 = vmatprep.subr.mxu0 0.0
  %737 = vmatpush1.msra.mxu0 0.0
  %738 = vmatprep.subr.mxu0 0.0
  %739 = vmatpush1.msra.mxu0 0.0
  %740 = vmatprep.subr.mxu0 0.0
  %741 = vmatpush1.msra.mxu0 0.0
  %742 = vmatprep.subr.mxu0 0.0
  %743 = vmatpush1.msra.mxu0 0.0
  %744 = vmatprep.subr.mxu0 0.0
  %745 = vmatpush1.msra.mxu0 0.0
  %746 = vmatprep.subr.mxu0 0.0
  %747 = vmatpush1.msra.mxu0 0.0
  %748 = vmatprep.subr.mxu0 0.0
  %749 = vmatpush1.msra.mxu0 0.0
  %750 = vmatprep.subr.mxu0 0.0
  %751 = vmatpush1.msra.mxu0 0.0
  %752 = vmatprep.subr.mxu0 0.0
  %753 = vmatpush1.msra.mxu0 0.0
  %754 = vmatprep.subr.mxu0 0.0
  %755 = vmatpush1.msra.mxu0 0.0
  %756 = vmatprep.subr.mxu0 0.0
  %757 = vmatpush1.msra.mxu0 0.0
  %758 = vmatprep.subr.mxu0 0.0
  %759 = vmatpush1.msra.mxu0 0.0
  %760 = vmatprep.subr.mxu0 0.0
  %761 = vmatpush1.msra.mxu0 0.0
  %762 = vmatprep.subr.mxu0 0.0
  %763 = vmatpush1.msra.mxu0 0.0
  %764 = vmatprep.subr.mxu0 0.0
  %765 = vmatpush1.msra.mxu0 0.0
  %766 = vmatprep.subr.mxu0 0.0
  %767 = vmatpush1.msra.mxu0 0.0
  %768 = vmatprep.subr.mxu0 0.0
  %769 = vmatpush1.msra.mxu0 0.0
  %770 = vmatprep.subr.mxu0 0.0
  %771 = vmatpush1.msra.mxu0 0.0
  %772 = vmatprep.subr.mxu0 0.0
  %773 = vmatpush1.msra.mxu0 0.0
  %774 = vmatprep.subr.mxu0 0.0
  %775 = vmatpush1.msra.mxu0 0.0
  %776 = vmatprep.subr.mxu0 0.0
  %777 = vmatpush1.msra.mxu0 0.0
  %778 = vmatprep.subr.mxu0 0.0
  %779 = vmatpush1.msra.mxu0 0.0
  %780 = vmatprep.subr.mxu0 0.0
  %781 = vmatpush1.msra.mxu0 0.0
  %782 = vmatprep.subr.mxu0 0.0
  %783 = vmatpush1.msra.mxu0 0.0
  %784 = vmatprep.subr.mxu0 0.0
  %785 = vmatpush1.msra.mxu0 0.0
  %786 = vmatprep.subr.mxu0 0.0
  %787 = vmatpush1.msra.mxu0 0.0
  %788 = vmatprep.subr.mxu0 0.0
  %789 = vmatpush1.msra.mxu0 0.0
  %790 = vmatprep.subr.mxu0 0.0
  %791 = vmatpush1.msra.mxu0 0.0
  %792 = vmatprep.subr.mxu0 0.0
  %793 = vmatpush1.msra.mxu0 0.0
  %794 = vmatprep.subr.mxu0 0.0
  %795 = vmatpush1.msra.mxu0 0.0
  %796 = vmatprep.subr.mxu0 0.0
  %797 = vmatpush1.msra.mxu0 0.0
  %798 = vmatprep.mubr.f32.mxu0 0.0
  %799 = vmatmul.mubr.f32.gmra.mrb[0].mxu0 %v732
  %v800 = vpop.f32.mrb[0].mxu0
  %v801 = vadd.f32 %v728, %v800
  %v802 = vpop.f32.mrb[0].mxu0
  %803 = vdwg.mxu0
  %804 = vmatprep.subr.mxu0 0.0
  %805 = vmatpush1.msra.mxu0 %v31
  %806 = vmatprep.subr.mxu0 0.0
  %807 = vmatpush1.msra.mxu0 %v32
  %808 = vmatprep.subr.mxu0 0.0
  %809 = vmatpush1.msra.mxu0 0.0
  %810 = vmatprep.subr.mxu0 0.0
  %811 = vmatpush1.msra.mxu0 0.0
  %812 = vmatprep.subr.mxu0 0.0
  %813 = vmatpush1.msra.mxu0 0.0
  %814 = vmatprep.subr.mxu0 0.0
  %815 = vmatpush1.msra.mxu0 0.0
  %816 = vmatprep.subr.mxu0 0.0
  %817 = vmatpush1.msra.mxu0 0.0
  %818 = vmatprep.subr.mxu0 0.0
  %819 = vmatpush1.msra.mxu0 0.0
  %820 = vmatprep.subr.mxu0 0.0
  %821 = vmatpush1.msra.mxu0 0.0
  %822 = vmatprep.subr.mxu0 0.0
  %823 = vmatpush1.msra.mxu0 0.0
  %824 = vmatprep.subr.mxu0 0.0
  %825 = vmatpush1.msra.mxu0 0.0
  %826 = vmatprep.subr.mxu0 0.0
  %827 = vmatpush1.msra.mxu0 0.0
  %828 = vmatprep.subr.mxu0 0.0
  %829 = vmatpush1.msra.mxu0 0.0
  %830 = vmatprep.subr.mxu0 0.0
  %831 = vmatpush1.msra.mxu0 0.0
  %832 = vmatprep.subr.mxu0 0.0
  %833 = vmatpush1.msra.mxu0 0.0
  %834 = vmatprep.subr.mxu0 0.0
  %835 = vmatpush1.msra.mxu0 0.0
  %836 = vmatprep.subr.mxu0 0.0
  %837 = vmatpush1.msra.mxu0 0.0
  %838 = vmatprep.subr.mxu0 0.0
  %839 = vmatpush1.msra.mxu0 0.0
  %840 = vmatprep.subr.mxu0 0.0
  %841 = vmatpush1.msra.mxu0 0.0
  %842 = vmatprep.subr.mxu0 0.0
  %843 = vmatpush1.msra.mxu0 0.0
  %844 = vmatprep.subr.mxu0 0.0
  %845 = vmatpush1.msra.mxu0 0.0
  %846 = vmatprep.subr.mxu0 0.0
  %847 = vmatpush1.msra.mxu0 0.0
  %848 = vmatprep.subr.mxu0 0.0
  %849 = vmatpush1.msra.mxu0 0.0
  %850 = vmatprep.subr.mxu0 0.0
  %851 = vmatpush1.msra.mxu0 0.0
  %852 = vmatprep.subr.mxu0 0.0
  %853 = vmatpush1.msra.mxu0 0.0
  %854 = vmatprep.subr.mxu0 0.0
  %855 = vmatpush1.msra.mxu0 0.0
  %856 = vmatprep.subr.mxu0 0.0
  %857 = vmatpush1.msra.mxu0 0.0
  %858 = vmatprep.subr.mxu0 0.0
  %859 = vmatpush1.msra.mxu0 0.0
  %860 = vmatprep.subr.mxu0 0.0
  %861 = vmatpush1.msra.mxu0 0.0
  %862 = vmatprep.subr.mxu0 0.0
  %863 = vmatpush1.msra.mxu0 0.0
  %864 = vmatprep.subr.mxu0 0.0
  %865 = vmatpush1.msra.mxu0 0.0
  %866 = vmatprep.subr.mxu0 0.0
  %867 = vmatpush1.msra.mxu0 0.0
  %868 = vmatprep.mubr.f32.mxu0 0.0
  %869 = vmatmul.mubr.f32.gmra.mrb[0].mxu0 %v580
  %v870 = vpop.f32.mrb[0].mxu0
  %v871 = vadd.f32 0.0, %v870
  %v872 = vpop.f32.mrb[0].mxu0
  %873 = vdwg.mxu0
  %v874 = vadd.f32 %v801, %v871
  %v875 = vadd.f32 %v874, %v272
  %v876 = vtanh.pop %v875
  %v878 = vsel %vm193, %v876, 0
  %880 = vmatprep.subr.mxu0 0.0
  %881 = vmatpush1.msra.mxu0 %v34
  %882 = vmatprep.subr.mxu0 0.0
  %883 = vmatpush1.msra.mxu0 %v35
  %884 = vmatprep.subr.mxu0 0.0
  %885 = vmatpush1.msra.mxu0 0.0
  %886 = vmatprep.subr.mxu0 0.0
  %887 = vmatpush1.msra.mxu0 0.0
  %888 = vmatprep.subr.mxu0 0.0
  %889 = vmatpush1.msra.mxu0 0.0
  %890 = vmatprep.subr.mxu0 0.0
  %891 = vmatpush1.msra.mxu0 0.0
  %892 = vmatprep.subr.mxu0 0.0
  %893 = vmatpush1.msra.mxu0 0.0
  %894 = vmatprep.subr.mxu0 0.0
  %895 = vmatpush1.msra.mxu0 0.0
  %896 = vmatprep.subr.mxu0 0.0
  %897 = vmatpush1.msra.mxu0 0.0
  %898 = vmatprep.subr.mxu0 0.0
  %899 = vmatpush1.msra.mxu0 0.0
  %900 = vmatprep.subr.mxu0 0.0
  %901 = vmatpush1.msra.mxu0 0.0
  %902 = vmatprep.subr.mxu0 0.0
  %903 = vmatpush1.msra.mxu0 0.0
  %904 = vmatprep.subr.mxu0 0.0
  %905 = vmatpush1.msra.mxu0 0.0
  %906 = vmatprep.subr.mxu0 0.0
  %907 = vmatpush1.msra.mxu0 0.0
  %908 = vmatprep.subr.mxu0 0.0
  %909 = vmatpush1.msra.mxu0 0.0
  %910 = vmatprep.subr.mxu0 0.0
  %911 = vmatpush1.msra.mxu0 0.0
  %912 = vmatprep.subr.mxu0 0.0
  %913 = vmatpush1.msra.mxu0 0.0
  %914 = vmatprep.subr.mxu0 0.0
  %915 = vmatpush1.msra.mxu0 0.0
  %916 = vmatprep.subr.mxu0 0.0
  %917 = vmatpush1.msra.mxu0 0.0
  %918 = vmatprep.subr.mxu0 0.0
  %919 = vmatpush1.msra.mxu0 0.0
  %920 = vmatprep.subr.mxu0 0.0
  %921 = vmatpush1.msra.mxu0 0.0
  %922 = vmatprep.subr.mxu0 0.0
  %923 = vmatpush1.msra.mxu0 0.0
  %924 = vmatprep.subr.mxu0 0.0
  %925 = vmatpush1.msra.mxu0 0.0
  %926 = vmatprep.subr.mxu0 0.0
  %927 = vmatpush1.msra.mxu0 0.0
  %928 = vmatprep.subr.mxu0 0.0
  %929 = vmatpush1.msra.mxu0 0.0
  %930 = vmatprep.subr.mxu0 0.0
  %931 = vmatpush1.msra.mxu0 0.0
  %932 = vmatprep.subr.mxu0 0.0
  %933 = vmatpush1.msra.mxu0 0.0
  %934 = vmatprep.subr.mxu0 0.0
  %935 = vmatpush1.msra.mxu0 0.0
  %936 = vmatprep.subr.mxu0 0.0
  %937 = vmatpush1.msra.mxu0 0.0
  %938 = vmatprep.subr.mxu0 0.0
  %939 = vmatpush1.msra.mxu0 0.0
  %940 = vmatprep.subr.mxu0 0.0
  %941 = vmatpush1.msra.mxu0 0.0
  %942 = vmatprep.subr.mxu0 0.0
  %943 = vmatpush1.msra.mxu0 0.0
  %944 = vmatprep.mubr.f32.mxu0 0.0
  %945 = vmatmul.mubr.f32.gmra.mrb[0].mxu0 %v878
  %v946 = vpop.f32.mrb[0].mxu0
  %v947 = vadd.f32 %v280, %v946
  %v948 = vpop.f32.mrb[0].mxu0
  %949 = vdwg.mxu0
  %s950 = scalar_lea.vmem %s8, 16
  %951 = vst.msk [vmem:[%s950] sm:$0xff] %vm39, %v947
  %s952 = scalar_lea.vmem %s0, 24
  %v953 = vld [vmem:[%s952] sm:$0xff]
  %s954 = scalar_lea.vmem %s1, 24
  %v955 = vld [vmem:[%s954] sm:$0xff]
  %v957 = vsel %vm39, %v955, 0
  %959 = vmatprep.subr.mxu0 0.0
  %960 = vmatpush1.msra.mxu0 %v45
  %961 = vmatprep.subr.mxu0 0.0
  %962 = vmatpush1.msra.mxu0 0.0
  %963 = vmatprep.subr.mxu0 0.0
  %964 = vmatpush1.msra.mxu0 0.0
  %965 = vmatprep.subr.mxu0 0.0
  %966 = vmatpush1.msra.mxu0 0.0
  %967 = vmatprep.subr.mxu0 0.0
  %968 = vmatpush1.msra.mxu0 0.0
  %969 = vmatprep.subr.mxu0 0.0
  %970 = vmatpush1.msra.mxu0 0.0
  %971 = vmatprep.subr.mxu0 0.0
  %972 = vmatpush1.msra.mxu0 0.0
  %973 = vmatprep.subr.mxu0 0.0
  %974 = vmatpush1.msra.mxu0 0.0
  %975 = vmatprep.subr.mxu0 0.0
  %976 = vmatpush1.msra.mxu0 0.0
  %977 = vmatprep.subr.mxu0 0.0
  %978 = vmatpush1.msra.mxu0 0.0
  %979 = vmatprep.subr.mxu0 0.0
  %980 = vmatpush1.msra.mxu0 0.0
  %981 = vmatprep.subr.mxu0 0.0
  %982 = vmatpush1.msra.mxu0 0.0
  %983 = vmatprep.subr.mxu0 0.0
  %984 = vmatpush1.msra.mxu0 0.0
  %985 = vmatprep.subr.mxu0 0.0
  %986 = vmatpush1.msra.mxu0 0.0
  %987 = vmatprep.subr.mxu0 0.0
  %988 = vmatpush1.msra.mxu0 0.0
  %989 = vmatprep.subr.mxu0 0.0
  %990 = vmatpush1.msra.mxu0 0.0
  %991 = vmatprep.subr.mxu0 0.0
  %992 = vmatpush1.msra.mxu0 0.0
  %993 = vmatprep.subr.mxu0 0.0
  %994 = vmatpush1.msra.mxu0 0.0
  %995 = vmatprep.subr.mxu0 0.0
  %996 = vmatpush1.msra.mxu0 0.0
  %997 = vmatprep.subr.mxu0 0.0
  %998 = vmatpush1.msra.mxu0 0.0
  %999 = vmatprep.subr.mxu0 0.0
  %1000 = vmatpush1.msra.mxu0 0.0
  %1001 = vmatprep.subr.mxu0 0.0
  %1002 = vmatpush1.msra.mxu0 0.0
  %1003 = vmatprep.subr.mxu0 0.0
  %1004 = vmatpush1.msra.mxu0 0.0
  %1005 = vmatprep.subr.mxu0 0.0
  %1006 = vmatpush1.msra.mxu0 0.0
  %1007 = vmatprep.subr.mxu0 0.0
  %1008 = vmatpush1.msra.mxu0 0.0
  %1009 = vmatprep.subr.mxu0 0.0
  %1010 = vmatpush1.msra.mxu0 0.0
  %1011 = vmatprep.subr.mxu0 0.0
  %1012 = vmatpush1.msra.mxu0 0.0
  %1013 = vmatprep.subr.mxu0 0.0
  %1014 = vmatpush1.msra.mxu0 0.0
  %1015 = vmatprep.subr.mxu0 0.0
  %1016 = vmatpush1.msra.mxu0 0.0
  %1017 = vmatprep.subr.mxu0 0.0
  %1018 = vmatpush1.msra.mxu0 0.0
  %1019 = vmatprep.subr.mxu0 0.0
  %1020 = vmatpush1.msra.mxu0 0.0
  %1021 = vmatprep.subr.mxu0 0.0
  %1022 = vmatpush1.msra.mxu0 0.0
  %1023 = vmatprep.mubr.f32.mxu0 0.0
  %1024 = vmatmul.mubr.f32.gmra.mrb[0].mxu0 %v957
  %v1025 = vpop.f32.mrb[0].mxu0
  %v1026 = vadd.f32 0.0, %v1025
  %v1027 = vpop.f32.mrb[0].mxu0
  %1028 = vdwg.mxu0
  %v1030 = vsel %vm39, %v953, 0
  %1032 = vmatprep.subr.mxu0 0.0
  %1033 = vmatpush1.msra.mxu0 %v121
  %1034 = vmatprep.subr.mxu0 0.0
  %1035 = vmatpush1.msra.mxu0 0.0
  %1036 = vmatprep.subr.mxu0 0.0
  %1037 = vmatpush1.msra.mxu0 0.0
  %1038 = vmatprep.subr.mxu0 0.0
  %1039 = vmatpush1.msra.mxu0 0.0
  %1040 = vmatprep.subr.mxu0 0.0
  %1041 = vmatpush1.msra.mxu0 0.0
  %1042 = vmatprep.subr.mxu0 0.0
  %1043 = vmatpush1.msra.mxu0 0.0
  %1044 = vmatprep.subr.mxu0 0.0
  %1045 = vmatpush1.msra.mxu0 0.0
  %1046 = vmatprep.subr.mxu0 0.0
  %1047 = vmatpush1.msra.mxu0 0.0
  %1048 = vmatprep.subr.mxu0 0.0
  %1049 = vmatpush1.msra.mxu0 0.0
  %1050 = vmatprep.subr.mxu0 0.0
  %1051 = vmatpush1.msra.mxu0 0.0
  %1052 = vmatprep.subr.mxu0 0.0
  %1053 = vmatpush1.msra.mxu0 0.0
  %1054 = vmatprep.subr.mxu0 0.0
  %1055 = vmatpush1.msra.mxu0 0.0
  %1056 = vmatprep.subr.mxu0 0.0
  %1057 = vmatpush1.msra.mxu0 0.0
  %1058 = vmatprep.subr.mxu0 0.0
  %1059 = vmatpush1.msra.mxu0 0.0
  %1060 = vmatprep.subr.mxu0 0.0
  %1061 = vmatpush1.msra.mxu0 0.0
  %1062 = vmatprep.subr.mxu0 0.0
  %1063 = vmatpush1.msra.mxu0 0.0
  %1064 = vmatprep.subr.mxu0 0.0
  %1065 = vmatpush1.msra.mxu0 0.0
  %1066 = vmatprep.subr.mxu0 0.0
  %1067 = vmatpush1.msra.mxu0 0.0
  %1068 = vmatprep.subr.mxu0 0.0
  %1069 = vmatpush1.msra.mxu0 0.0
  %1070 = vmatprep.subr.mxu0 0.0
  %1071 = vmatpush1.msra.mxu0 0.0
  %1072 = vmatprep.subr.mxu0 0.0
  %1073 = vmatpush1.msra.mxu0 0.0
  %1074 = vmatprep.subr.mxu0 0.0
  %1075 = vmatpush1.msra.mxu0 0.0
  %1076 = vmatprep.subr.mxu0 0.0
  %1077 = vmatpush1.msra.mxu0 0.0
  %1078 = vmatprep.subr.mxu0 0.0
  %1079 = vmatpush1.msra.mxu0 0.0
  %1080 = vmatprep.subr.mxu0 0.0
  %1081 = vmatpush1.msra.mxu0 0.0
  %1082 = vmatprep.subr.mxu0 0.0
  %1083 = vmatpush1.msra.mxu0 0.0
  %1084 = vmatprep.subr.mxu0 0.0
  %1085 = vmatpush1.msra.mxu0 0.0
  %1086 = vmatprep.subr.mxu0 0.0
  %1087 = vmatpush1.msra.mxu0 0.0
  %1088 = vmatprep.subr.mxu0 0.0
  %1089 = vmatpush1.msra.mxu0 0.0
  %1090 = vmatprep.subr.mxu0 0.0
  %1091 = vmatpush1.msra.mxu0 0.0
  %1092 = vmatprep.subr.mxu0 0.0
  %1093 = vmatpush1.msra.mxu0 0.0
  %1094 = vmatprep.subr.mxu0 0.0
  %1095 = vmatpush1.msra.mxu0 0.0
  %1096 = vmatprep.mubr.f32.mxu0 0.0
  %1097 = vmatmul.mubr.f32.gmra.mrb[0].mxu0 %v1030
  %v1098 = vpop.f32.mrb[0].mxu0
  %v1099 = vadd.f32 %v1026, %v1098
  %v1100 = vpop.f32.mrb[0].mxu0
  %1101 = vdwg.mxu0
  %1102 = vmatprep.subr.mxu0 0.0
  %1103 = vmatpush1.msra.mxu0 %v31
  %1104 = vmatprep.subr.mxu0 0.0
  %1105 = vmatpush1.msra.mxu0 %v32
  %1106 = vmatprep.subr.mxu0 0.0
  %1107 = vmatpush1.msra.mxu0 0.0
  %1108 = vmatprep.subr.mxu0 0.0
  %1109 = vmatpush1.msra.mxu0 0.0
  %1110 = vmatprep.subr.mxu0 0.0
  %1111 = vmatpush1.msra.mxu0 0.0
  %1112 = vmatprep.subr.mxu0 0.0
  %1113 = vmatpush1.msra.mxu0 0.0
  %1114 = vmatprep.subr.mxu0 0.0
  %1115 = vmatpush1.msra.mxu0 0.0
  %1116 = vmatprep.subr.mxu0 0.0
  %1117 = vmatpush1.msra.mxu0 0.0
  %1118 = vmatprep.subr.mxu0 0.0
  %1119 = vmatpush1.msra.mxu0 0.0
  %1120 = vmatprep.subr.mxu0 0.0
  %1121 = vmatpush1.msra.mxu0 0.0
  %1122 = vmatprep.subr.mxu0 0.0
  %1123 = vmatpush1.msra.mxu0 0.0
  %1124 = vmatprep.subr.mxu0 0.0
  %1125 = vmatpush1.msra.mxu0 0.0
  %1126 = vmatprep.subr.mxu0 0.0
  %1127 = vmatpush1.msra.mxu0 0.0
  %1128 = vmatprep.subr.mxu0 0.0
  %1129 = vmatpush1.msra.mxu0 0.0
  %1130 = vmatprep.subr.mxu0 0.0
  %1131 = vmatpush1.msra.mxu0 0.0
  %1132 = vmatprep.subr.mxu0 0.0
  %1133 = vmatpush1.msra.mxu0 0.0
  %1134 = vmatprep.subr.mxu0 0.0
  %1135 = vmatpush1.msra.mxu0 0.0
  %1136 = vmatprep.subr.mxu0 0.0
  %1137 = vmatpush1.msra.mxu0 0.0
  %1138 = vmatprep.subr.mxu0 0.0
  %1139 = vmatpush1.msra.mxu0 0.0
  %1140 = vmatprep.subr.mxu0 0.0
  %1141 = vmatpush1.msra.mxu0 0.0
  %1142 = vmatprep.subr.mxu0 0.0
  %1143 = vmatpush1.msra.mxu0 0.0
  %1144 = vmatprep.subr.mxu0 0.0
  %1145 = vmatpush1.msra.mxu0 0.0
  %1146 = vmatprep.subr.mxu0 0.0
  %1147 = vmatpush1.msra.mxu0 0.0
  %1148 = vmatprep.subr.mxu0 0.0
  %1149 = vmatpush1.msra.mxu0 0.0
  %1150 = vmatprep.subr.mxu0 0.0
  %1151 = vmatpush1.msra.mxu0 0.0
  %1152 = vmatprep.subr.mxu0 0.0
  %1153 = vmatpush1.msra.mxu0 0.0
  %1154 = vmatprep.subr.mxu0 0.0
  %1155 = vmatpush1.msra.mxu0 0.0
  %1156 = vmatprep.subr.mxu0 0.0
  %1157 = vmatpush1.msra.mxu0 0.0
  %1158 = vmatprep.subr.mxu0 0.0
  %1159 = vmatpush1.msra.mxu0 0.0
  %1160 = vmatprep.subr.mxu0 0.0
  %1161 = vmatpush1.msra.mxu0 0.0
  %1162 = vmatprep.subr.mxu0 0.0
  %1163 = vmatpush1.msra.mxu0 0.0
  %1164 = vmatprep.subr.mxu0 0.0
  %1165 = vmatpush1.msra.mxu0 0.0
  %1166 = vmatprep.mubr.f32.mxu0 0.0
  %1167 = vmatmul.mubr.f32.gmra.mrb[0].mxu0 %v878
  %v1168 = vpop.f32.mrb[0].mxu0
  %v1169 = vadd.f32 0.0, %v1168
  %v1170 = vpop.f32.mrb[0].mxu0
  %1171 = vdwg.mxu0
  %v1172 = vadd.f32 %v1099, %v1169
  %v1173 = vadd.f32 %v1172, %v272
  %v1174 = vtanh.pop %v1173
  %v1176 = vsel %vm193, %v1174, 0
  %1178 = vmatprep.subr.mxu0 0.0
  %1179 = vmatpush1.msra.mxu0 %v34
  %1180 = vmatprep.subr.mxu0 0.0
  %1181 = vmatpush1.msra.mxu0 %v35
  %1182 = vmatprep.subr.mxu0 0.0
  %1183 = vmatpush1.msra.mxu0 0.0
  %1184 = vmatprep.subr.mxu0 0.0
  %1185 = vmatpush1.msra.mxu0 0.0
  %1186 = vmatprep.subr.mxu0 0.0
  %1187 = vmatpush1.msra.mxu0 0.0
  %1188 = vmatprep.subr.mxu0 0.0
  %1189 = vmatpush1.msra.mxu0 0.0
  %1190 = vmatprep.subr.mxu0 0.0
  %1191 = vmatpush1.msra.mxu0 0.0
  %1192 = vmatprep.subr.mxu0 0.0
  %1193 = vmatpush1.msra.mxu0 0.0
  %1194 = vmatprep.subr.mxu0 0.0
  %1195 = vmatpush1.msra.mxu0 0.0
  %1196 = vmatprep.subr.mxu0 0.0
  %1197 = vmatpush1.msra.mxu0 0.0
  %1198 = vmatprep.subr.mxu0 0.0
  %1199 = vmatpush1.msra.mxu0 0.0
  %1200 = vmatprep.subr.mxu0 0.0
  %1201 = vmatpush1.msra.mxu0 0.0
  %1202 = vmatprep.subr.mxu0 0.0
  %1203 = vmatpush1.msra.mxu0 0.0
  %1204 = vmatprep.subr.mxu0 0.0
  %1205 = vmatpush1.msra.mxu0 0.0
  %1206 = vmatprep.subr.mxu0 0.0
  %1207 = vmatpush1.msra.mxu0 0.0
  %1208 = vmatprep.subr.mxu0 0.0
  %1209 = vmatpush1.msra.mxu0 0.0
  %1210 = vmatprep.subr.mxu0 0.0
  %1211 = vmatpush1.msra.mxu0 0.0
  %1212 = vmatprep.subr.mxu0 0.0
  %1213 = vmatpush1.msra.mxu0 0.0
  %1214 = vmatprep.subr.mxu0 0.0
  %1215 = vmatpush1.msra.mxu0 0.0
  %1216 = vmatprep.subr.mxu0 0.0
  %1217 = vmatpush1.msra.mxu0 0.0
  %1218 = vmatprep.subr.mxu0 0.0
  %1219 = vmatpush1.msra.mxu0 0.0
  %1220 = vmatprep.subr.mxu0 0.0
  %1221 = vmatpush1.msra.mxu0 0.0
  %1222 = vmatprep.subr.mxu0 0.0
  %1223 = vmatpush1.msra.mxu0 0.0
  %1224 = vmatprep.subr.mxu0 0.0
  %1225 = vmatpush1.msra.mxu0 0.0
  %1226 = vmatprep.subr.mxu0 0.0
  %1227 = vmatpush1.msra.mxu0 0.0
  %1228 = vmatprep.subr.mxu0 0.0
  %1229 = vmatpush1.msra.mxu0 0.0
  %1230 = vmatprep.subr.mxu0 0.0
  %1231 = vmatpush1.msra.mxu0 0.0
  %1232 = vmatprep.subr.mxu0 0.0
  %1233 = vmatpush1.msra.mxu0 0.0
  %1234 = vmatprep.subr.mxu0 0.0
  %1235 = vmatpush1.msra.mxu0 0.0
  %1236 = vmatprep.subr.mxu0 0.0
  %1237 = vmatpush1.msra.mxu0 0.0
  %1238 = vmatprep.subr.mxu0 0.0
  %1239 = vmatpush1.msra.mxu0 0.0
  %1240 = vmatprep.subr.mxu0 0.0
  %1241 = vmatpush1.msra.mxu0 0.0
  %1242 = vmatprep.mubr.f32.mxu0 0.0
  %1243 = vmatmul.mubr.f32.gmra.mrb[0].mxu0 %v1176
  %v1244 = vpop.f32.mrb[0].mxu0
  %v1245 = vadd.f32 %v280, %v1244
  %v1246 = vpop.f32.mrb[0].mxu0
  %1247 = vdwg.mxu0
  %s1248 = scalar_lea.vmem %s8, 24
  %1249 = vst.msk [vmem:[%s1248] sm:$0xff] %vm39, %v1245
  %s1250 = scalar_lea.vmem %s0, 32
  %v1251 = vld [vmem:[%s1250] sm:$0xff]
  %s1252 = scalar_lea.vmem %s1, 32
  %v1253 = vld [vmem:[%s1252] sm:$0xff]
  %v1255 = vsel %vm39, %v1253, 0
  %1257 = vmatprep.subr.mxu0 0.0
  %1258 = vmatpush1.msra.mxu0 %v45
  %1259 = vmatprep.subr.mxu0 0.0
  %1260 = vmatpush1.msra.mxu0 0.0
  %1261 = vmatprep.subr.mxu0 0.0
  %1262 = vmatpush1.msra.mxu0 0.0
  %1263 = vmatprep.subr.mxu0 0.0
  %1264 = vmatpush1.msra.mxu0 0.0
  %1265 = vmatprep.subr.mxu0 0.0
  %1266 = vmatpush1.msra.mxu0 0.0
  %1267 = vmatprep.subr.mxu0 0.0
  %1268 = vmatpush1.msra.mxu0 0.0
  %1269 = vmatprep.subr.mxu0 0.0
  %1270 = vmatpush1.msra.mxu0 0.0
  %1271 = vmatprep.subr.mxu0 0.0
  %1272 = vmatpush1.msra.mxu0 0.0
  %1273 = vmatprep.subr.mxu0 0.0
  %1274 = vmatpush1.msra.mxu0 0.0
  %1275 = vmatprep.subr.mxu0 0.0
  %1276 = vmatpush1.msra.mxu0 0.0
  %1277 = vmatprep.subr.mxu0 0.0
  %1278 = vmatpush1.msra.mxu0 0.0
  %1279 = vmatprep.subr.mxu0 0.0
  %1280 = vmatpush1.msra.mxu0 0.0
  %1281 = vmatprep.subr.mxu0 0.0
  %1282 = vmatpush1.msra.mxu0 0.0
  %1283 = vmatprep.subr.mxu0 0.0
  %1284 = vmatpush1.msra.mxu0 0.0
  %1285 = vmatprep.subr.mxu0 0.0
  %1286 = vmatpush1.msra.mxu0 0.0
  %1287 = vmatprep.subr.mxu0 0.0
  %1288 = vmatpush1.msra.mxu0 0.0
  %1289 = vmatprep.subr.mxu0 0.0
  %1290 = vmatpush1.msra.mxu0 0.0
  %1291 = vmatprep.subr.mxu0 0.0
  %1292 = vmatpush1.msra.mxu0 0.0
  %1293 = vmatprep.subr.mxu0 0.0
  %1294 = vmatpush1.msra.mxu0 0.0
  %1295 = vmatprep.subr.mxu0 0.0
  %1296 = vmatpush1.msra.mxu0 0.0
  %1297 = vmatprep.subr.mxu0 0.0
  %1298 = vmatpush1.msra.mxu0 0.0
  %1299 = vmatprep.subr.mxu0 0.0
  %1300 = vmatpush1.msra.mxu0 0.0
  %1301 = vmatprep.subr.mxu0 0.0
  %1302 = vmatpush1.msra.mxu0 0.0
  %1303 = vmatprep.subr.mxu0 0.0
  %1304 = vmatpush1.msra.mxu0 0.0
  %1305 = vmatprep.subr.mxu0 0.0
  %1306 = vmatpush1.msra.mxu0 0.0
  %1307 = vmatprep.subr.mxu0 0.0
  %1308 = vmatpush1.msra.mxu0 0.0
  %1309 = vmatprep.subr.mxu0 0.0
  %1310 = vmatpush1.msra.mxu0 0.0
  %1311 = vmatprep.subr.mxu0 0.0
  %1312 = vmatpush1.msra.mxu0 0.0
  %1313 = vmatprep.subr.mxu0 0.0
  %1314 = vmatpush1.msra.mxu0 0.0
  %1315 = vmatprep.subr.mxu0 0.0
  %1316 = vmatpush1.msra.mxu0 0.0
  %1317 = vmatprep.subr.mxu0 0.0
  %1318 = vmatpush1.msra.mxu0 0.0
  %1319 = vmatprep.subr.mxu0 0.0
  %1320 = vmatpush1.msra.mxu0 0.0
  %1321 = vmatprep.mubr.f32.mxu0 0.0
  %1322 = vmatmul.mubr.f32.gmra.mrb[0].mxu0 %v1255
  %v1323 = vpop.f32.mrb[0].mxu0
  %v1324 = vadd.f32 0.0, %v1323
  %v1325 = vpop.f32.mrb[0].mxu0
  %1326 = vdwg.mxu0
  %v1328 = vsel %vm39, %v1251, 0
  %1330 = vmatprep.subr.mxu0 0.0
  %1331 = vmatpush1.msra.mxu0 %v121
  %1332 = vmatprep.subr.mxu0 0.0
  %1333 = vmatpush1.msra.mxu0 0.0
  %1334 = vmatprep.subr.mxu0 0.0
  %1335 = vmatpush1.msra.mxu0 0.0
  %1336 = vmatprep.subr.mxu0 0.0
  %1337 = vmatpush1.msra.mxu0 0.0
  %1338 = vmatprep.subr.mxu0 0.0
  %1339 = vmatpush1.msra.mxu0 0.0
  %1340 = vmatprep.subr.mxu0 0.0
  %1341 = vmatpush1.msra.mxu0 0.0
  %1342 = vmatprep.subr.mxu0 0.0
  %1343 = vmatpush1.msra.mxu0 0.0
  %1344 = vmatprep.subr.mxu0 0.0
  %1345 = vmatpush1.msra.mxu0 0.0
  %1346 = vmatprep.subr.mxu0 0.0
  %1347 = vmatpush1.msra.mxu0 0.0
  %1348 = vmatprep.subr.mxu0 0.0
  %1349 = vmatpush1.msra.mxu0 0.0
  %1350 = vmatprep.subr.mxu0 0.0
  %1351 = vmatpush1.msra.mxu0 0.0
  %1352 = vmatprep.subr.mxu0 0.0
  %1353 = vmatpush1.msra.mxu0 0.0
  %1354 = vmatprep.subr.mxu0 0.0
  %1355 = vmatpush1.msra.mxu0 0.0
  %1356 = vmatprep.subr.mxu0 0.0
  %1357 = vmatpush1.msra.mxu0 0.0
  %1358 = vmatprep.subr.mxu0 0.0
  %1359 = vmatpush1.msra.mxu0 0.0
  %1360 = vmatprep.subr.mxu0 0.0
  %1361 = vmatpush1.msra.mxu0 0.0
  %1362 = vmatprep.subr.mxu0 0.0
  %1363 = vmatpush1.msra.mxu0 0.0
  %1364 = vmatprep.subr.mxu0 0.0
  %1365 = vmatpush1.msra.mxu0 0.0
  %1366 = vmatprep.subr.mxu0 0.0
  %1367 = vmatpush1.msra.mxu0 0.0
  %1368 = vmatprep.subr.mxu0 0.0
  %1369 = vmatpush1.msra.mxu0 0.0
  %1370 = vmatprep.subr.mxu0 0.0
  %1371 = vmatpush1.msra.mxu0 0.0
  %1372 = vmatprep.subr.mxu0 0.0
  %1373 = vmatpush1.msra.mxu0 0.0
  %1374 = vmatprep.subr.mxu0 0.0
  %1375 = vmatpush1.msra.mxu0 0.0
  %1376 = vmatprep.subr.mxu0 0.0
  %1377 = vmatpush1.msra.mxu0 0.0
  %1378 = vmatprep.subr.mxu0 0.0
  %1379 = vmatpush1.msra.mxu0 0.0
  %1380 = vmatprep.subr.mxu0 0.0
  %1381 = vmatpush1.msra.mxu0 0.0
  %1382 = vmatprep.subr.mxu0 0.0
  %1383 = vmatpush1.msra.mxu0 0.0
  %1384 = vmatprep.subr.mxu0 0.0
  %1385 = vmatpush1.msra.mxu0 0.0
  %1386 = vmatprep.subr.mxu0 0.0
  %1387 = vmatpush1.msra.mxu0 0.0
  %1388 = vmatprep.subr.mxu0 0.0
  %1389 = vmatpush1.msra.mxu0 0.0
  %1390 = vmatprep.subr.mxu0 0.0
  %1391 = vmatpush1.msra.mxu0 0.0
  %1392 = vmatprep.subr.mxu0 0.0
  %1393 = vmatpush1.msra.mxu0 0.0
  %1394 = vmatprep.mubr.f32.mxu0 0.0
  %1395 = vmatmul.mubr.f32.gmra.mrb[0].mxu0 %v1328
  %v1396 = vpop.f32.mrb[0].mxu0
  %v1397 = vadd.f32 %v1324, %v1396
  %v1398 = vpop.f32.mrb[0].mxu0
  %1399 = vdwg.mxu0
  %1400 = vmatprep.subr.mxu0 0.0
  %1401 = vmatpush1.msra.mxu0 %v31
  %1402 = vmatprep.subr.mxu0 0.0
  %1403 = vmatpush1.msra.mxu0 %v32
  %1404 = vmatprep.subr.mxu0 0.0
  %1405 = vmatpush1.msra.mxu0 0.0
  %1406 = vmatprep.subr.mxu0 0.0
  %1407 = vmatpush1.msra.mxu0 0.0
  %1408 = vmatprep.subr.mxu0 0.0
  %1409 = vmatpush1.msra.mxu0 0.0
  %1410 = vmatprep.subr.mxu0 0.0
  %1411 = vmatpush1.msra.mxu0 0.0
  %1412 = vmatprep.subr.mxu0 0.0
  %1413 = vmatpush1.msra.mxu0 0.0
  %1414 = vmatprep.subr.mxu0 0.0
  %1415 = vmatpush1.msra.mxu0 0.0
  %1416 = vmatprep.subr.mxu0 0.0
  %1417 = vmatpush1.msra.mxu0 0.0
  %1418 = vmatprep.subr.mxu0 0.0
  %1419 = vmatpush1.msra.mxu0 0.0
  %1420 = vmatprep.subr.mxu0 0.0
  %1421 = vmatpush1.msra.mxu0 0.0
  %1422 = vmatprep.subr.mxu0 0.0
  %1423 = vmatpush1.msra.mxu0 0.0
  %1424 = vmatprep.subr.mxu0 0.0
  %1425 = vmatpush1.msra.mxu0 0.0
  %1426 = vmatprep.subr.mxu0 0.0
  %1427 = vmatpush1.msra.mxu0 0.0
  %1428 = vmatprep.subr.mxu0 0.0
  %1429 = vmatpush1.msra.mxu0 0.0
  %1430 = vmatprep.subr.mxu0 0.0
  %1431 = vmatpush1.msra.mxu0 0.0
  %1432 = vmatprep.subr.mxu0 0.0
  %1433 = vmatpush1.msra.mxu0 0.0
  %1434 = vmatprep.subr.mxu0 0.0
  %1435 = vmatpush1.msra.mxu0 0.0
  %1436 = vmatprep.subr.mxu0 0.0
  %1437 = vmatpush1.msra.mxu0 0.0
  %1438 = vmatprep.subr.mxu0 0.0
  %1439 = vmatpush1.msra.mxu0 0.0
  %1440 = vmatprep.subr.mxu0 0.0
  %1441 = vmatpush1.msra.mxu0 0.0
  %1442 = vmatprep.subr.mxu0 0.0
  %1443 = vmatpush1.msra.mxu0 0.0
  %1444 = vmatprep.subr.mxu0 0.0
  %1445 = vmatpush1.msra.mxu0 0.0
  %1446 = vmatprep.subr.mxu0 0.0
  %1447 = vmatpush1.msra.mxu0 0.0
  %1448 = vmatprep.subr.mxu0 0.0
  %1449 = vmatpush1.msra.mxu0 0.0
  %1450 = vmatprep.subr.mxu0 0.0
  %1451 = vmatpush1.msra.mxu0 0.0
  %1452 = vmatprep.subr.mxu0 0.0
  %1453 = vmatpush1.msra.mxu0 0.0
  %1454 = vmatprep.subr.mxu0 0.0
  %1455 = vmatpush1.msra.mxu0 0.0
  %1456 = vmatprep.subr.mxu0 0.0
  %1457 = vmatpush1.msra.mxu0 0.0
  %1458 = vmatprep.subr.mxu0 0.0
  %1459 = vmatpush1.msra.mxu0 0.0
  %1460 = vmatprep.subr.mxu0 0.0
  %1461 = vmatpush1.msra.mxu0 0.0
  %1462 = vmatprep.subr.mxu0 0.0
  %1463 = vmatpush1.msra.mxu0 0.0
  %1464 = vmatprep.mubr.f32.mxu0 0.0
  %1465 = vmatmul.mubr.f32.gmra.mrb[0].mxu0 %v1176
  %v1466 = vpop.f32.mrb[0].mxu0
  %v1467 = vadd.f32 0.0, %v1466
  %v1468 = vpop.f32.mrb[0].mxu0
  %1469 = vdwg.mxu0
  %v1470 = vadd.f32 %v1397, %v1467
  %v1471 = vadd.f32 %v1470, %v272
  %v1472 = vtanh.pop %v1471
  %v1474 = vsel %vm193, %v1472, 0
  %1476 = vmatprep.subr.mxu0 0.0
  %1477 = vmatpush1.msra.mxu0 %v34
  %1478 = vmatprep.subr.mxu0 0.0
  %1479 = vmatpush1.msra.mxu0 %v35
  %1480 = vmatprep.subr.mxu0 0.0
  %1481 = vmatpush1.msra.mxu0 0.0
  %1482 = vmatprep.subr.mxu0 0.0
  %1483 = vmatpush1.msra.mxu0 0.0
  %1484 = vmatprep.subr.mxu0 0.0
  %1485 = vmatpush1.msra.mxu0 0.0
  %1486 = vmatprep.subr.mxu0 0.0
  %1487 = vmatpush1.msra.mxu0 0.0
  %1488 = vmatprep.subr.mxu0 0.0
  %1489 = vmatpush1.msra.mxu0 0.0
  %1490 = vmatprep.subr.mxu0 0.0
  %1491 = vmatpush1.msra.mxu0 0.0
  %1492 = vmatprep.subr.mxu0 0.0
  %1493 = vmatpush1.msra.mxu0 0.0
  %1494 = vmatprep.subr.mxu0 0.0
  %1495 = vmatpush1.msra.mxu0 0.0
  %1496 = vmatprep.subr.mxu0 0.0
  %1497 = vmatpush1.msra.mxu0 0.0
  %1498 = vmatprep.subr.mxu0 0.0
  %1499 = vmatpush1.msra.mxu0 0.0
  %1500 = vmatprep.subr.mxu0 0.0
  %1501 = vmatpush1.msra.mxu0 0.0
  %1502 = vmatprep.subr.mxu0 0.0
  %1503 = vmatpush1.msra.mxu0 0.0
  %1504 = vmatprep.subr.mxu0 0.0
  %1505 = vmatpush1.msra.mxu0 0.0
  %1506 = vmatprep.subr.mxu0 0.0
  %1507 = vmatpush1.msra.mxu0 0.0
  %1508 = vmatprep.subr.mxu0 0.0
  %1509 = vmatpush1.msra.mxu0 0.0
  %1510 = vmatprep.subr.mxu0 0.0
  %1511 = vmatpush1.msra.mxu0 0.0
  %1512 = vmatprep.subr.mxu0 0.0
  %1513 = vmatpush1.msra.mxu0 0.0
  %1514 = vmatprep.subr.mxu0 0.0
  %1515 = vmatpush1.msra.mxu0 0.0
  %1516 = vmatprep.subr.mxu0 0.0
  %1517 = vmatpush1.msra.mxu0 0.0
  %1518 = vmatprep.subr.mxu0 0.0
  %1519 = vmatpush1.msra.mxu0 0.0
  %1520 = vmatprep.subr.mxu0 0.0
  %1521 = vmatpush1.msra.mxu0 0.0
  %1522 = vmatprep.subr.mxu0 0.0
  %1523 = vmatpush1.msra.mxu0 0.0
  %1524 = vmatprep.subr.mxu0 0.0
  %1525 = vmatpush1.msra.mxu0 0.0
  %1526 = vmatprep.subr.mxu0 0.0
  %1527 = vmatpush1.msra.mxu0 0.0
  %1528 = vmatprep.subr.mxu0 0.0
  %1529 = vmatpush1.msra.mxu0 0.0
  %1530 = vmatprep.subr.mxu0 0.0
  %1531 = vmatpush1.msra.mxu0 0.0
  %1532 = vmatprep.subr.mxu0 0.0
  %1533 = vmatpush1.msra.mxu0 0.0
  %1534 = vmatprep.subr.mxu0 0.0
  %1535 = vmatpush1.msra.mxu0 0.0
  %1536 = vmatprep.subr.mxu0 0.0
  %1537 = vmatpush1.msra.mxu0 0.0
  %1538 = vmatprep.subr.mxu0 0.0
  %1539 = vmatpush1.msra.mxu0 0.0
  %1540 = vmatprep.mubr.f32.mxu0 0.0
  %1541 = vmatmul.mubr.f32.gmra.mrb[0].mxu0 %v1474
  %v1542 = vpop.f32.mrb[0].mxu0
  %v1543 = vadd.f32 %v280, %v1542
  %v1544 = vpop.f32.mrb[0].mxu0
  %1545 = vdwg.mxu0
  %s1546 = scalar_lea.vmem %s8, 32
  %1547 = vst.msk [vmem:[%s1546] sm:$0xff] %vm39, %v1543
  %s1548 = scalar_lea.vmem %s0, 40
  %v1549 = vld [vmem:[%s1548] sm:$0xff]
  %s1550 = scalar_lea.vmem %s1, 40
  %v1551 = vld [vmem:[%s1550] sm:$0xff]
  %v1553 = vsel %vm39, %v1551, 0
  %1555 = vmatprep.subr.mxu0 0.0
  %1556 = vmatpush1.msra.mxu0 %v45
  %1557 = vmatprep.subr.mxu0 0.0
  %1558 = vmatpush1.msra.mxu0 0.0
  %1559 = vmatprep.subr.mxu0 0.0
  %1560 = vmatpush1.msra.mxu0 0.0
  %1561 = vmatprep.subr.mxu0 0.0
  %1562 = vmatpush1.msra.mxu0 0.0
  %1563 = vmatprep.subr.mxu0 0.0
  %1564 = vmatpush1.msra.mxu0 0.0
  %1565 = vmatprep.subr.mxu0 0.0
  %1566 = vmatpush1.msra.mxu0 0.0
  %1567 = vmatprep.subr.mxu0 0.0
  %1568 = vmatpush1.msra.mxu0 0.0
  %1569 = vmatprep.subr.mxu0 0.0
  %1570 = vmatpush1.msra.mxu0 0.0
  %1571 = vmatprep.subr.mxu0 0.0
  %1572 = vmatpush1.msra.mxu0 0.0
  %1573 = vmatprep.subr.mxu0 0.0
  %1574 = vmatpush1.msra.mxu0 0.0
  %1575 = vmatprep.subr.mxu0 0.0
  %1576 = vmatpush1.msra.mxu0 0.0
  %1577 = vmatprep.subr.mxu0 0.0
  %1578 = vmatpush1.msra.mxu0 0.0
  %1579 = vmatprep.subr.mxu0 0.0
  %1580 = vmatpush1.msra.mxu0 0.0
  %1581 = vmatprep.subr.mxu0 0.0
  %1582 = vmatpush1.msra.mxu0 0.0
  %1583 = vmatprep.subr.mxu0 0.0
  %1584 = vmatpush1.msra.mxu0 0.0
  %1585 = vmatprep.subr.mxu0 0.0
  %1586 = vmatpush1.msra.mxu0 0.0
  %1587 = vmatprep.subr.mxu0 0.0
  %1588 = vmatpush1.msra.mxu0 0.0
  %1589 = vmatprep.subr.mxu0 0.0
  %1590 = vmatpush1.msra.mxu0 0.0
  %1591 = vmatprep.subr.mxu0 0.0
  %1592 = vmatpush1.msra.mxu0 0.0
  %1593 = vmatprep.subr.mxu0 0.0
  %1594 = vmatpush1.msra.mxu0 0.0
  %1595 = vmatprep.subr.mxu0 0.0
  %1596 = vmatpush1.msra.mxu0 0.0
  %1597 = vmatprep.subr.mxu0 0.0
  %1598 = vmatpush1.msra.mxu0 0.0
  %1599 = vmatprep.subr.mxu0 0.0
  %1600 = vmatpush1.msra.mxu0 0.0
  %1601 = vmatprep.subr.mxu0 0.0
  %1602 = vmatpush1.msra.mxu0 0.0
  %1603 = vmatprep.subr.mxu0 0.0
  %1604 = vmatpush1.msra.mxu0 0.0
  %1605 = vmatprep.subr.mxu0 0.0
  %1606 = vmatpush1.msra.mxu0 0.0
  %1607 = vmatprep.subr.mxu0 0.0
  %1608 = vmatpush1.msra.mxu0 0.0
  %1609 = vmatprep.subr.mxu0 0.0
  %1610 = vmatpush1.msra.mxu0 0.0
  %1611 = vmatprep.subr.mxu0 0.0
  %1612 = vmatpush1.msra.mxu0 0.0
  %1613 = vmatprep.subr.mxu0 0.0
  %1614 = vmatpush1.msra.mxu0 0.0
  %1615 = vmatprep.subr.mxu0 0.0
  %1616 = vmatpush1.msra.mxu0 0.0
  %1617 = vmatprep.subr.mxu0 0.0
  %1618 = vmatpush1.msra.mxu0 0.0
  %1619 = vmatprep.mubr.f32.mxu0 0.0
  %1620 = vmatmul.mubr.f32.gmra.mrb[0].mxu0 %v1553
  %v1621 = vpop.f32.mrb[0].mxu0
  %v1622 = vadd.f32 0.0, %v1621
  %v1623 = vpop.f32.mrb[0].mxu0
  %1624 = vdwg.mxu0
  %v1626 = vsel %vm39, %v1549, 0
  %1628 = vmatprep.subr.mxu0 0.0
  %1629 = vmatpush1.msra.mxu0 %v121
  %1630 = vmatprep.subr.mxu0 0.0
  %1631 = vmatpush1.msra.mxu0 0.0
  %1632 = vmatprep.subr.mxu0 0.0
  %1633 = vmatpush1.msra.mxu0 0.0
  %1634 = vmatprep.subr.mxu0 0.0
  %1635 = vmatpush1.msra.mxu0 0.0
  %1636 = vmatprep.subr.mxu0 0.0
  %1637 = vmatpush1.msra.mxu0 0.0
  %1638 = vmatprep.subr.mxu0 0.0
  %1639 = vmatpush1.msra.mxu0 0.0
  %1640 = vmatprep.subr.mxu0 0.0
  %1641 = vmatpush1.msra.mxu0 0.0
  %1642 = vmatprep.subr.mxu0 0.0
  %1643 = vmatpush1.msra.mxu0 0.0
  %1644 = vmatprep.subr.mxu0 0.0
  %1645 = vmatpush1.msra.mxu0 0.0
  %1646 = vmatprep.subr.mxu0 0.0
  %1647 = vmatpush1.msra.mxu0 0.0
  %1648 = vmatprep.subr.mxu0 0.0
  %1649 = vmatpush1.msra.mxu0 0.0
  %1650 = vmatprep.subr.mxu0 0.0
  %1651 = vmatpush1.msra.mxu0 0.0
  %1652 = vmatprep.subr.mxu0 0.0
  %1653 = vmatpush1.msra.mxu0 0.0
  %1654 = vmatprep.subr.mxu0 0.0
  %1655 = vmatpush1.msra.mxu0 0.0
  %1656 = vmatprep.subr.mxu0 0.0
  %1657 = vmatpush1.msra.mxu0 0.0
  %1658 = vmatprep.subr.mxu0 0.0
  %1659 = vmatpush1.msra.mxu0 0.0
  %1660 = vmatprep.subr.mxu0 0.0
  %1661 = vmatpush1.msra.mxu0 0.0
  %1662 = vmatprep.subr.mxu0 0.0
  %1663 = vmatpush1.msra.mxu0 0.0
  %1664 = vmatprep.subr.mxu0 0.0
  %1665 = vmatpush1.msra.mxu0 0.0
  %1666 = vmatprep.subr.mxu0 0.0
  %1667 = vmatpush1.msra.mxu0 0.0
  %1668 = vmatprep.subr.mxu0 0.0
  %1669 = vmatpush1.msra.mxu0 0.0
  %1670 = vmatprep.subr.mxu0 0.0
  %1671 = vmatpush1.msra.mxu0 0.0
  %1672 = vmatprep.subr.mxu0 0.0
  %1673 = vmatpush1.msra.mxu0 0.0
  %1674 = vmatprep.subr.mxu0 0.0
  %1675 = vmatpush1.msra.mxu0 0.0
  %1676 = vmatprep.subr.mxu0 0.0
  %1677 = vmatpush1.msra.mxu0 0.0
  %1678 = vmatprep.subr.mxu0 0.0
  %1679 = vmatpush1.msra.mxu0 0.0
  %1680 = vmatprep.subr.mxu0 0.0
  %1681 = vmatpush1.msra.mxu0 0.0
  %1682 = vmatprep.subr.mxu0 0.0
  %1683 = vmatpush1.msra.mxu0 0.0
  %1684 = vmatprep.subr.mxu0 0.0
  %1685 = vmatpush1.msra.mxu0 0.0
  %1686 = vmatprep.subr.mxu0 0.0
  %1687 = vmatpush1.msra.mxu0 0.0
  %1688 = vmatprep.subr.mxu0 0.0
  %1689 = vmatpush1.msra.mxu0 0.0
  %1690 = vmatprep.subr.mxu0 0.0
  %1691 = vmatpush1.msra.mxu0 0.0
  %1692 = vmatprep.mubr.f32.mxu0 0.0
  %1693 = vmatmul.mubr.f32.gmra.mrb[0].mxu0 %v1626
  %v1694 = vpop.f32.mrb[0].mxu0
  %v1695 = vadd.f32 %v1622, %v1694
  %v1696 = vpop.f32.mrb[0].mxu0
  %1697 = vdwg.mxu0
  %1698 = vmatprep.subr.mxu0 0.0
  %1699 = vmatpush1.msra.mxu0 %v31
  %1700 = vmatprep.subr.mxu0 0.0
  %1701 = vmatpush1.msra.mxu0 %v32
  %1702 = vmatprep.subr.mxu0 0.0
  %1703 = vmatpush1.msra.mxu0 0.0
  %1704 = vmatprep.subr.mxu0 0.0
  %1705 = vmatpush1.msra.mxu0 0.0
  %1706 = vmatprep.subr.mxu0 0.0
  %1707 = vmatpush1.msra.mxu0 0.0
  %1708 = vmatprep.subr.mxu0 0.0
  %1709 = vmatpush1.msra.mxu0 0.0
  %1710 = vmatprep.subr.mxu0 0.0
  %1711 = vmatpush1.msra.mxu0 0.0
  %1712 = vmatprep.subr.mxu0 0.0
  %1713 = vmatpush1.msra.mxu0 0.0
  %1714 = vmatprep.subr.mxu0 0.0
  %1715 = vmatpush1.msra.mxu0 0.0
  %1716 = vmatprep.subr.mxu0 0.0
  %1717 = vmatpush1.msra.mxu0 0.0
  %1718 = vmatprep.subr.mxu0 0.0
  %1719 = vmatpush1.msra.mxu0 0.0
  %1720 = vmatprep.subr.mxu0 0.0
  %1721 = vmatpush1.msra.mxu0 0.0
  %1722 = vmatprep.subr.mxu0 0.0
  %1723 = vmatpush1.msra.mxu0 0.0
  %1724 = vmatprep.subr.mxu0 0.0
  %1725 = vmatpush1.msra.mxu0 0.0
  %1726 = vmatprep.subr.mxu0 0.0
  %1727 = vmatpush1.msra.mxu0 0.0
  %1728 = vmatprep.subr.mxu0 0.0
  %1729 = vmatpush1.msra.mxu0 0.0
  %1730 = vmatprep.subr.mxu0 0.0
  %1731 = vmatpush1.msra.mxu0 0.0
  %1732 = vmatprep.subr.mxu0 0.0
  %1733 = vmatpush1.msra.mxu0 0.0
  %1734 = vmatprep.subr.mxu0 0.0
  %1735 = vmatpush1.msra.mxu0 0.0
  %1736 = vmatprep.subr.mxu0 0.0
  %1737 = vmatpush1.msra.mxu0 0.0
  %1738 = vmatprep.subr.mxu0 0.0
  %1739 = vmatpush1.msra.mxu0 0.0
  %1740 = vmatprep.subr.mxu0 0.0
  %1741 = vmatpush1.msra.mxu0 0.0
  %1742 = vmatprep.subr.mxu0 0.0
  %1743 = vmatpush1.msra.mxu0 0.0
  %1744 = vmatprep.subr.mxu0 0.0
  %1745 = vmatpush1.msra.mxu0 0.0
  %1746 = vmatprep.subr.mxu0 0.0
  %1747 = vmatpush1.msra.mxu0 0.0
  %1748 = vmatprep.subr.mxu0 0.0
  %1749 = vmatpush1.msra.mxu0 0.0
  %1750 = vmatprep.subr.mxu0 0.0
  %1751 = vmatpush1.msra.mxu0 0.0
  %1752 = vmatprep.subr.mxu0 0.0
  %1753 = vmatpush1.msra.mxu0 0.0
  %1754 = vmatprep.subr.mxu0 0.0
  %1755 = vmatpush1.msra.mxu0 0.0
  %1756 = vmatprep.subr.mxu0 0.0
  %1757 = vmatpush1.msra.mxu0 0.0
  %1758 = vmatprep.subr.mxu0 0.0
  %1759 = vmatpush1.msra.mxu0 0.0
  %1760 = vmatprep.subr.mxu0 0.0
  %1761 = vmatpush1.msra.mxu0 0.0
  %1762 = vmatprep.mubr.f32.mxu0 0.0
  %1763 = vmatmul.mubr.f32.gmra.mrb[0].mxu0 %v1474
  %v1764 = vpop.f32.mrb[0].mxu0
  %v1765 = vadd.f32 0.0, %v1764
  %v1766 = vpop.f32.mrb[0].mxu0
  %1767 = vdwg.mxu0
  %v1768 = vadd.f32 %v1695, %v1765
  %v1769 = vadd.f32 %v1768, %v272
  %v1770 = vtanh.pop %v1769
  %v1772 = vsel %vm193, %v1770, 0
  %1774 = vmatprep.subr.mxu0 0.0
  %1775 = vmatpush1.msra.mxu0 %v34
  %1776 = vmatprep.subr.mxu0 0.0
  %1777 = vmatpush1.msra.mxu0 %v35
  %1778 = vmatprep.subr.mxu0 0.0
  %1779 = vmatpush1.msra.mxu0 0.0
  %1780 = vmatprep.subr.mxu0 0.0
  %1781 = vmatpush1.msra.mxu0 0.0
  %1782 = vmatprep.subr.mxu0 0.0
  %1783 = vmatpush1.msra.mxu0 0.0
  %1784 = vmatprep.subr.mxu0 0.0
  %1785 = vmatpush1.msra.mxu0 0.0
  %1786 = vmatprep.subr.mxu0 0.0
  %1787 = vmatpush1.msra.mxu0 0.0
  %1788 = vmatprep.subr.mxu0 0.0
  %1789 = vmatpush1.msra.mxu0 0.0
  %1790 = vmatprep.subr.mxu0 0.0
  %1791 = vmatpush1.msra.mxu0 0.0
  %1792 = vmatprep.subr.mxu0 0.0
  %1793 = vmatpush1.msra.mxu0 0.0
  %1794 = vmatprep.subr.mxu0 0.0
  %1795 = vmatpush1.msra.mxu0 0.0
  %1796 = vmatprep.subr.mxu0 0.0
  %1797 = vmatpush1.msra.mxu0 0.0
  %1798 = vmatprep.subr.mxu0 0.0
  %1799 = vmatpush1.msra.mxu0 0.0
  %1800 = vmatprep.subr.mxu0 0.0
  %1801 = vmatpush1.msra.mxu0 0.0
  %1802 = vmatprep.subr.mxu0 0.0
  %1803 = vmatpush1.msra.mxu0 0.0
  %1804 = vmatprep.subr.mxu0 0.0
  %1805 = vmatpush1.msra.mxu0 0.0
  %1806 = vmatprep.subr.mxu0 0.0
  %1807 = vmatpush1.msra.mxu0 0.0
  %1808 = vmatprep.subr.mxu0 0.0
  %1809 = vmatpush1.msra.mxu0 0.0
  %1810 = vmatprep.subr.mxu0 0.0
  %1811 = vmatpush1.msra.mxu0 0.0
  %1812 = vmatprep.subr.mxu0 0.0
  %1813 = vmatpush1.msra.mxu0 0.0
  %1814 = vmatprep.subr.mxu0 0.0
  %1815 = vmatpush1.msra.mxu0 0.0
  %1816 = vmatprep.subr.mxu0 0.0
  %1817 = vmatpush1.msra.mxu0 0.0
  %1818 = vmatprep.subr.mxu0 0.0
  %1819 = vmatpush1.msra.mxu0 0.0
  %1820 = vmatprep.subr.mxu0 0.0
  %1821 = vmatpush1.msra.mxu0 0.0
  %1822 = vmatprep.subr.mxu0 0.0
  %1823 = vmatpush1.msra.mxu0 0.0
  %1824 = vmatprep.subr.mxu0 0.0
  %1825 = vmatpush1.msra.mxu0 0.0
  %1826 = vmatprep.subr.mxu0 0.0
  %1827 = vmatpush1.msra.mxu0 0.0
  %1828 = vmatprep.subr.mxu0 0.0
  %1829 = vmatpush1.msra.mxu0 0.0
  %1830 = vmatprep.subr.mxu0 0.0
  %1831 = vmatpush1.msra.mxu0 0.0
  %1832 = vmatprep.subr.mxu0 0.0
  %1833 = vmatpush1.msra.mxu0 0.0
  %1834 = vmatprep.subr.mxu0 0.0
  %1835 = vmatpush1.msra.mxu0 0.0
  %1836 = vmatprep.subr.mxu0 0.0
  %1837 = vmatpush1.msra.mxu0 0.0
  %1838 = vmatprep.mubr.f32.mxu0 0.0
  %1839 = vmatmul.mubr.f32.gmra.mrb[0].mxu0 %v1772
  %v1840 = vpop.f32.mrb[0].mxu0
  %v1841 = vadd.f32 %v280, %v1840
  %v1842 = vpop.f32.mrb[0].mxu0
  %1843 = vdwg.mxu0
  %s1844 = scalar_lea.vmem %s8, 40
  %1845 = vst.msk [vmem:[%s1844] sm:$0xff] %vm39, %v1841
  %s1846 = scalar_lea.vmem %s0, 48
  %v1847 = vld [vmem:[%s1846] sm:$0xff]
  %s1848 = scalar_lea.vmem %s1, 48
  %v1849 = vld [vmem:[%s1848] sm:$0xff]
  %v1851 = vsel %vm39, %v1849, 0
  %1853 = vmatprep.subr.mxu0 0.0
  %1854 = vmatpush1.msra.mxu0 %v45
  %1855 = vmatprep.subr.mxu0 0.0
  %1856 = vmatpush1.msra.mxu0 0.0
  %1857 = vmatprep.subr.mxu0 0.0
  %1858 = vmatpush1.msra.mxu0 0.0
  %1859 = vmatprep.subr.mxu0 0.0
  %1860 = vmatpush1.msra.mxu0 0.0
  %1861 = vmatprep.subr.mxu0 0.0
  %1862 = vmatpush1.msra.mxu0 0.0
  %1863 = vmatprep.subr.mxu0 0.0
  %1864 = vmatpush1.msra.mxu0 0.0
  %1865 = vmatprep.subr.mxu0 0.0
  %1866 = vmatpush1.msra.mxu0 0.0
  %1867 = vmatprep.subr.mxu0 0.0
  %1868 = vmatpush1.msra.mxu0 0.0
  %1869 = vmatprep.subr.mxu0 0.0
  %1870 = vmatpush1.msra.mxu0 0.0
  %1871 = vmatprep.subr.mxu0 0.0
  %1872 = vmatpush1.msra.mxu0 0.0
  %1873 = vmatprep.subr.mxu0 0.0
  %1874 = vmatpush1.msra.mxu0 0.0
  %1875 = vmatprep.subr.mxu0 0.0
  %1876 = vmatpush1.msra.mxu0 0.0
  %1877 = vmatprep.subr.mxu0 0.0
  %1878 = vmatpush1.msra.mxu0 0.0
  %1879 = vmatprep.subr.mxu0 0.0
  %1880 = vmatpush1.msra.mxu0 0.0
  %1881 = vmatprep.subr.mxu0 0.0
  %1882 = vmatpush1.msra.mxu0 0.0
  %1883 = vmatprep.subr.mxu0 0.0
  %1884 = vmatpush1.msra.mxu0 0.0
  %1885 = vmatprep.subr.mxu0 0.0
  %1886 = vmatpush1.msra.mxu0 0.0
  %1887 = vmatprep.subr.mxu0 0.0
  %1888 = vmatpush1.msra.mxu0 0.0
  %1889 = vmatprep.subr.mxu0 0.0
  %1890 = vmatpush1.msra.mxu0 0.0
  %1891 = vmatprep.subr.mxu0 0.0
  %1892 = vmatpush1.msra.mxu0 0.0
  %1893 = vmatprep.subr.mxu0 0.0
  %1894 = vmatpush1.msra.mxu0 0.0
  %1895 = vmatprep.subr.mxu0 0.0
  %1896 = vmatpush1.msra.mxu0 0.0
  %1897 = vmatprep.subr.mxu0 0.0
  %1898 = vmatpush1.msra.mxu0 0.0
  %1899 = vmatprep.subr.mxu0 0.0
  %1900 = vmatpush1.msra.mxu0 0.0
  %1901 = vmatprep.subr.mxu0 0.0
  %1902 = vmatpush1.msra.mxu0 0.0
  %1903 = vmatprep.subr.mxu0 0.0
  %1904 = vmatpush1.msra.mxu0 0.0
  %1905 = vmatprep.subr.mxu0 0.0
  %1906 = vmatpush1.msra.mxu0 0.0
  %1907 = vmatprep.subr.mxu0 0.0
  %1908 = vmatpush1.msra.mxu0 0.0
  %1909 = vmatprep.subr.mxu0 0.0
  %1910 = vmatpush1.msra.mxu0 0.0
  %1911 = vmatprep.subr.mxu0 0.0
  %1912 = vmatpush1.msra.mxu0 0.0
  %1913 = vmatprep.subr.mxu0 0.0
  %1914 = vmatpush1.msra.mxu0 0.0
  %1915 = vmatprep.subr.mxu0 0.0
  %1916 = vmatpush1.msra.mxu0 0.0
  %1917 = vmatprep.mubr.f32.mxu0 0.0
  %1918 = vmatmul.mubr.f32.gmra.mrb[0].mxu0 %v1851
  %v1919 = vpop.f32.mrb[0].mxu0
  %v1920 = vadd.f32 0.0, %v1919
  %v1921 = vpop.f32.mrb[0].mxu0
  %1922 = vdwg.mxu0
  %v1924 = vsel %vm39, %v1847, 0
  %1926 = vmatprep.subr.mxu0 0.0
  %1927 = vmatpush1.msra.mxu0 %v121
  %1928 = vmatprep.subr.mxu0 0.0
  %1929 = vmatpush1.msra.mxu0 0.0
  %1930 = vmatprep.subr.mxu0 0.0
  %1931 = vmatpush1.msra.mxu0 0.0
  %1932 = vmatprep.subr.mxu0 0.0
  %1933 = vmatpush1.msra.mxu0 0.0
  %1934 = vmatprep.subr.mxu0 0.0
  %1935 = vmatpush1.msra.mxu0 0.0
  %1936 = vmatprep.subr.mxu0 0.0
  %1937 = vmatpush1.msra.mxu0 0.0
  %1938 = vmatprep.subr.mxu0 0.0
  %1939 = vmatpush1.msra.mxu0 0.0
  %1940 = vmatprep.subr.mxu0 0.0
  %1941 = vmatpush1.msra.mxu0 0.0
  %1942 = vmatprep.subr.mxu0 0.0
  %1943 = vmatpush1.msra.mxu0 0.0
  %1944 = vmatprep.subr.mxu0 0.0
  %1945 = vmatpush1.msra.mxu0 0.0
  %1946 = vmatprep.subr.mxu0 0.0
  %1947 = vmatpush1.msra.mxu0 0.0
  %1948 = vmatprep.subr.mxu0 0.0
  %1949 = vmatpush1.msra.mxu0 0.0
  %1950 = vmatprep.subr.mxu0 0.0
  %1951 = vmatpush1.msra.mxu0 0.0
  %1952 = vmatprep.subr.mxu0 0.0
  %1953 = vmatpush1.msra.mxu0 0.0
  %1954 = vmatprep.subr.mxu0 0.0
  %1955 = vmatpush1.msra.mxu0 0.0
  %1956 = vmatprep.subr.mxu0 0.0
  %1957 = vmatpush1.msra.mxu0 0.0
  %1958 = vmatprep.subr.mxu0 0.0
  %1959 = vmatpush1.msra.mxu0 0.0
  %1960 = vmatprep.subr.mxu0 0.0
  %1961 = vmatpush1.msra.mxu0 0.0
  %1962 = vmatprep.subr.mxu0 0.0
  %1963 = vmatpush1.msra.mxu0 0.0
  %1964 = vmatprep.subr.mxu0 0.0
  %1965 = vmatpush1.msra.mxu0 0.0
  %1966 = vmatprep.subr.mxu0 0.0
  %1967 = vmatpush1.msra.mxu0 0.0
  %1968 = vmatprep.subr.mxu0 0.0
  %1969 = vmatpush1.msra.mxu0 0.0
  %1970 = vmatprep.subr.mxu0 0.0
  %1971 = vmatpush1.msra.mxu0 0.0
  %1972 = vmatprep.subr.mxu0 0.0
  %1973 = vmatpush1.msra.mxu0 0.0
  %1974 = vmatprep.subr.mxu0 0.0
  %1975 = vmatpush1.msra.mxu0 0.0
  %1976 = vmatprep.subr.mxu0 0.0
  %1977 = vmatpush1.msra.mxu0 0.0
  %1978 = vmatprep.subr.mxu0 0.0
  %1979 = vmatpush1.msra.mxu0 0.0
  %1980 = vmatprep.subr.mxu0 0.0
  %1981 = vmatpush1.msra.mxu0 0.0
  %1982 = vmatprep.subr.mxu0 0.0
  %1983 = vmatpush1.msra.mxu0 0.0
  %1984 = vmatprep.subr.mxu0 0.0
  %1985 = vmatpush1.msra.mxu0 0.0
  %1986 = vmatprep.subr.mxu0 0.0
  %1987 = vmatpush1.msra.mxu0 0.0
  %1988 = vmatprep.subr.mxu0 0.0
  %1989 = vmatpush1.msra.mxu0 0.0
  %1990 = vmatprep.mubr.f32.mxu0 0.0
  %1991 = vmatmul.mubr.f32.gmra.mrb[0].mxu0 %v1924
  %v1992 = vpop.f32.mrb[0].mxu0
  %v1993 = vadd.f32 %v1920, %v1992
  %v1994 = vpop.f32.mrb[0].mxu0
  %1995 = vdwg.mxu0
  %1996 = vmatprep.subr.mxu0 0.0
  %1997 = vmatpush1.msra.mxu0 %v31
  %1998 = vmatprep.subr.mxu0 0.0
  %1999 = vmatpush1.msra.mxu0 %v32
  %2000 = vmatprep.subr.mxu0 0.0
  %2001 = vmatpush1.msra.mxu0 0.0
  %2002 = vmatprep.subr.mxu0 0.0
  %2003 = vmatpush1.msra.mxu0 0.0
  %2004 = vmatprep.subr.mxu0 0.0
  %2005 = vmatpush1.msra.mxu0 0.0
  %2006 = vmatprep.subr.mxu0 0.0
  %2007 = vmatpush1.msra.mxu0 0.0
  %2008 = vmatprep.subr.mxu0 0.0
  %2009 = vmatpush1.msra.mxu0 0.0
  %2010 = vmatprep.subr.mxu0 0.0
  %2011 = vmatpush1.msra.mxu0 0.0
  %2012 = vmatprep.subr.mxu0 0.0
  %2013 = vmatpush1.msra.mxu0 0.0
  %2014 = vmatprep.subr.mxu0 0.0
  %2015 = vmatpush1.msra.mxu0 0.0
  %2016 = vmatprep.subr.mxu0 0.0
  %2017 = vmatpush1.msra.mxu0 0.0
  %2018 = vmatprep.subr.mxu0 0.0
  %2019 = vmatpush1.msra.mxu0 0.0
  %2020 = vmatprep.subr.mxu0 0.0
  %2021 = vmatpush1.msra.mxu0 0.0
  %2022 = vmatprep.subr.mxu0 0.0
  %2023 = vmatpush1.msra.mxu0 0.0
  %2024 = vmatprep.subr.mxu0 0.0
  %2025 = vmatpush1.msra.mxu0 0.0
  %2026 = vmatprep.subr.mxu0 0.0
  %2027 = vmatpush1.msra.mxu0 0.0
  %2028 = vmatprep.subr.mxu0 0.0
  %2029 = vmatpush1.msra.mxu0 0.0
  %2030 = vmatprep.subr.mxu0 0.0
  %2031 = vmatpush1.msra.mxu0 0.0
  %2032 = vmatprep.subr.mxu0 0.0
  %2033 = vmatpush1.msra.mxu0 0.0
  %2034 = vmatprep.subr.mxu0 0.0
  %2035 = vmatpush1.msra.mxu0 0.0
  %2036 = vmatprep.subr.mxu0 0.0
  %2037 = vmatpush1.msra.mxu0 0.0
  %2038 = vmatprep.subr.mxu0 0.0
  %2039 = vmatpush1.msra.mxu0 0.0
  %2040 = vmatprep.subr.mxu0 0.0
  %2041 = vmatpush1.msra.mxu0 0.0
  %2042 = vmatprep.subr.mxu0 0.0
  %2043 = vmatpush1.msra.mxu0 0.0
  %2044 = vmatprep.subr.mxu0 0.0
  %2045 = vmatpush1.msra.mxu0 0.0
  %2046 = vmatprep.subr.mxu0 0.0
  %2047 = vmatpush1.msra.mxu0 0.0
  %2048 = vmatprep.subr.mxu0 0.0
  %2049 = vmatpush1.msra.mxu0 0.0
  %2050 = vmatprep.subr.mxu0 0.0
  %2051 = vmatpush1.msra.mxu0 0.0
  %2052 = vmatprep.subr.mxu0 0.0
  %2053 = vmatpush1.msra.mxu0 0.0
  %2054 = vmatprep.subr.mxu0 0.0
  %2055 = vmatpush1.msra.mxu0 0.0
  %2056 = vmatprep.subr.mxu0 0.0
  %2057 = vmatpush1.msra.mxu0 0.0
  %2058 = vmatprep.subr.mxu0 0.0
  %2059 = vmatpush1.msra.mxu0 0.0
  %2060 = vmatprep.mubr.f32.mxu0 0.0
  %2061 = vmatmul.mubr.f32.gmra.mrb[0].mxu0 %v1772
  %v2062 = vpop.f32.mrb[0].mxu0
  %v2063 = vadd.f32 0.0, %v2062
  %v2064 = vpop.f32.mrb[0].mxu0
  %2065 = vdwg.mxu0
  %v2066 = vadd.f32 %v1993, %v2063
  %v2067 = vadd.f32 %v2066, %v272
  %v2068 = vtanh.pop %v2067
  %v2070 = vsel %vm193, %v2068, 0
  %2072 = vmatprep.subr.mxu0 0.0
  %2073 = vmatpush1.msra.mxu0 %v34
  %2074 = vmatprep.subr.mxu0 0.0
  %2075 = vmatpush1.msra.mxu0 %v35
  %2076 = vmatprep.subr.mxu0 0.0
  %2077 = vmatpush1.msra.mxu0 0.0
  %2078 = vmatprep.subr.mxu0 0.0
  %2079 = vmatpush1.msra.mxu0 0.0
  %2080 = vmatprep.subr.mxu0 0.0
  %2081 = vmatpush1.msra.mxu0 0.0
  %2082 = vmatprep.subr.mxu0 0.0
  %2083 = vmatpush1.msra.mxu0 0.0
  %2084 = vmatprep.subr.mxu0 0.0
  %2085 = vmatpush1.msra.mxu0 0.0
  %2086 = vmatprep.subr.mxu0 0.0
  %2087 = vmatpush1.msra.mxu0 0.0
  %2088 = vmatprep.subr.mxu0 0.0
  %2089 = vmatpush1.msra.mxu0 0.0
  %2090 = vmatprep.subr.mxu0 0.0
  %2091 = vmatpush1.msra.mxu0 0.0
  %2092 = vmatprep.subr.mxu0 0.0
  %2093 = vmatpush1.msra.mxu0 0.0
  %2094 = vmatprep.subr.mxu0 0.0
  %2095 = vmatpush1.msra.mxu0 0.0
  %2096 = vmatprep.subr.mxu0 0.0
  %2097 = vmatpush1.msra.mxu0 0.0
  %2098 = vmatprep.subr.mxu0 0.0
  %2099 = vmatpush1.msra.mxu0 0.0
  %2100 = vmatprep.subr.mxu0 0.0
  %2101 = vmatpush1.msra.mxu0 0.0
  %2102 = vmatprep.subr.mxu0 0.0
  %2103 = vmatpush1.msra.mxu0 0.0
  %2104 = vmatprep.subr.mxu0 0.0
  %2105 = vmatpush1.msra.mxu0 0.0
  %2106 = vmatprep.subr.mxu0 0.0
  %2107 = vmatpush1.msra.mxu0 0.0
  %2108 = vmatprep.subr.mxu0 0.0
  %2109 = vmatpush1.msra.mxu0 0.0
  %2110 = vmatprep.subr.mxu0 0.0
  %2111 = vmatpush1.msra.mxu0 0.0
  %2112 = vmatprep.subr.mxu0 0.0
  %2113 = vmatpush1.msra.mxu0 0.0
  %2114 = vmatprep.subr.mxu0 0.0
  %2115 = vmatpush1.msra.mxu0 0.0
  %2116 = vmatprep.subr.mxu0 0.0
  %2117 = vmatpush1.msra.mxu0 0.0
  %2118 = vmatprep.subr.mxu0 0.0
  %2119 = vmatpush1.msra.mxu0 0.0
  %2120 = vmatprep.subr.mxu0 0.0
  %2121 = vmatpush1.msra.mxu0 0.0
  %2122 = vmatprep.subr.mxu0 0.0
  %2123 = vmatpush1.msra.mxu0 0.0
  %2124 = vmatprep.subr.mxu0 0.0
  %2125 = vmatpush1.msra.mxu0 0.0
  %2126 = vmatprep.subr.mxu0 0.0
  %2127 = vmatpush1.msra.mxu0 0.0
  %2128 = vmatprep.subr.mxu0 0.0
  %2129 = vmatpush1.msra.mxu0 0.0
  %2130 = vmatprep.subr.mxu0 0.0
  %2131 = vmatpush1.msra.mxu0 0.0
  %2132 = vmatprep.subr.mxu0 0.0
  %2133 = vmatpush1.msra.mxu0 0.0
  %2134 = vmatprep.subr.mxu0 0.0
  %2135 = vmatpush1.msra.mxu0 0.0
  %2136 = vmatprep.mubr.f32.mxu0 0.0
  %2137 = vmatmul.mubr.f32.gmra.mrb[0].mxu0 %v2070
  %v2138 = vpop.f32.mrb[0].mxu0
  %v2139 = vadd.f32 %v280, %v2138
  %v2140 = vpop.f32.mrb[0].mxu0
  %2141 = vdwg.mxu0
  %s2142 = scalar_lea.vmem %s8, 48
  %2143 = vst.msk [vmem:[%s2142] sm:$0xff] %vm39, %v2139
  %s2144 = scalar_lea.vmem %s0, 56
  %v2145 = vld [vmem:[%s2144] sm:$0xff]
  %s2146 = scalar_lea.vmem %s1, 56
  %v2147 = vld [vmem:[%s2146] sm:$0xff]
  %v2149 = vsel %vm39, %v2147, 0
  %2151 = vmatprep.subr.mxu0 0.0
  %2152 = vmatpush1.msra.mxu0 %v45
  %2153 = vmatprep.subr.mxu0 0.0
  %2154 = vmatpush1.msra.mxu0 0.0
  %2155 = vmatprep.subr.mxu0 0.0
  %2156 = vmatpush1.msra.mxu0 0.0
  %2157 = vmatprep.subr.mxu0 0.0
  %2158 = vmatpush1.msra.mxu0 0.0
  %2159 = vmatprep.subr.mxu0 0.0
  %2160 = vmatpush1.msra.mxu0 0.0
  %2161 = vmatprep.subr.mxu0 0.0
  %2162 = vmatpush1.msra.mxu0 0.0
  %2163 = vmatprep.subr.mxu0 0.0
  %2164 = vmatpush1.msra.mxu0 0.0
  %2165 = vmatprep.subr.mxu0 0.0
  %2166 = vmatpush1.msra.mxu0 0.0
  %2167 = vmatprep.subr.mxu0 0.0
  %2168 = vmatpush1.msra.mxu0 0.0
  %2169 = vmatprep.subr.mxu0 0.0
  %2170 = vmatpush1.msra.mxu0 0.0
  %2171 = vmatprep.subr.mxu0 0.0
  %2172 = vmatpush1.msra.mxu0 0.0
  %2173 = vmatprep.subr.mxu0 0.0
  %2174 = vmatpush1.msra.mxu0 0.0
  %2175 = vmatprep.subr.mxu0 0.0
  %2176 = vmatpush1.msra.mxu0 0.0
  %2177 = vmatprep.subr.mxu0 0.0
  %2178 = vmatpush1.msra.mxu0 0.0
  %2179 = vmatprep.subr.mxu0 0.0
  %2180 = vmatpush1.msra.mxu0 0.0
  %2181 = vmatprep.subr.mxu0 0.0
  %2182 = vmatpush1.msra.mxu0 0.0
  %2183 = vmatprep.subr.mxu0 0.0
  %2184 = vmatpush1.msra.mxu0 0.0
  %2185 = vmatprep.subr.mxu0 0.0
  %2186 = vmatpush1.msra.mxu0 0.0
  %2187 = vmatprep.subr.mxu0 0.0
  %2188 = vmatpush1.msra.mxu0 0.0
  %2189 = vmatprep.subr.mxu0 0.0
  %2190 = vmatpush1.msra.mxu0 0.0
  %2191 = vmatprep.subr.mxu0 0.0
  %2192 = vmatpush1.msra.mxu0 0.0
  %2193 = vmatprep.subr.mxu0 0.0
  %2194 = vmatpush1.msra.mxu0 0.0
  %2195 = vmatprep.subr.mxu0 0.0
  %2196 = vmatpush1.msra.mxu0 0.0
  %2197 = vmatprep.subr.mxu0 0.0
  %2198 = vmatpush1.msra.mxu0 0.0
  %2199 = vmatprep.subr.mxu0 0.0
  %2200 = vmatpush1.msra.mxu0 0.0
  %2201 = vmatprep.subr.mxu0 0.0
  %2202 = vmatpush1.msra.mxu0 0.0
  %2203 = vmatprep.subr.mxu0 0.0
  %2204 = vmatpush1.msra.mxu0 0.0
  %2205 = vmatprep.subr.mxu0 0.0
  %2206 = vmatpush1.msra.mxu0 0.0
  %2207 = vmatprep.subr.mxu0 0.0
  %2208 = vmatpush1.msra.mxu0 0.0
  %2209 = vmatprep.subr.mxu0 0.0
  %2210 = vmatpush1.msra.mxu0 0.0
  %2211 = vmatprep.subr.mxu0 0.0
  %2212 = vmatpush1.msra.mxu0 0.0
  %2213 = vmatprep.subr.mxu0 0.0
  %2214 = vmatpush1.msra.mxu0 0.0
  %2215 = vmatprep.mubr.f32.mxu0 0.0
  %2216 = vmatmul.mubr.f32.gmra.mrb[0].mxu0 %v2149
  %v2217 = vpop.f32.mrb[0].mxu0
  %v2218 = vadd.f32 0.0, %v2217
  %v2219 = vpop.f32.mrb[0].mxu0
  %2220 = vdwg.mxu0
  %v2222 = vsel %vm39, %v2145, 0
  %2224 = vmatprep.subr.mxu0 0.0
  %2225 = vmatpush1.msra.mxu0 %v121
  %2226 = vmatprep.subr.mxu0 0.0
  %2227 = vmatpush1.msra.mxu0 0.0
  %2228 = vmatprep.subr.mxu0 0.0
  %2229 = vmatpush1.msra.mxu0 0.0
  %2230 = vmatprep.subr.mxu0 0.0
  %2231 = vmatpush1.msra.mxu0 0.0
  %2232 = vmatprep.subr.mxu0 0.0
  %2233 = vmatpush1.msra.mxu0 0.0
  %2234 = vmatprep.subr.mxu0 0.0
  %2235 = vmatpush1.msra.mxu0 0.0
  %2236 = vmatprep.subr.mxu0 0.0
  %2237 = vmatpush1.msra.mxu0 0.0
  %2238 = vmatprep.subr.mxu0 0.0
  %2239 = vmatpush1.msra.mxu0 0.0
  %2240 = vmatprep.subr.mxu0 0.0
  %2241 = vmatpush1.msra.mxu0 0.0
  %2242 = vmatprep.subr.mxu0 0.0
  %2243 = vmatpush1.msra.mxu0 0.0
  %2244 = vmatprep.subr.mxu0 0.0
  %2245 = vmatpush1.msra.mxu0 0.0
  %2246 = vmatprep.subr.mxu0 0.0
  %2247 = vmatpush1.msra.mxu0 0.0
  %2248 = vmatprep.subr.mxu0 0.0
  %2249 = vmatpush1.msra.mxu0 0.0
  %2250 = vmatprep.subr.mxu0 0.0
  %2251 = vmatpush1.msra.mxu0 0.0
  %2252 = vmatprep.subr.mxu0 0.0
  %2253 = vmatpush1.msra.mxu0 0.0
  %2254 = vmatprep.subr.mxu0 0.0
  %2255 = vmatpush1.msra.mxu0 0.0
  %2256 = vmatprep.subr.mxu0 0.0
  %2257 = vmatpush1.msra.mxu0 0.0
  %2258 = vmatprep.subr.mxu0 0.0
  %2259 = vmatpush1.msra.mxu0 0.0
  %2260 = vmatprep.subr.mxu0 0.0
  %2261 = vmatpush1.msra.mxu0 0.0
  %2262 = vmatprep.subr.mxu0 0.0
  %2263 = vmatpush1.msra.mxu0 0.0
  %2264 = vmatprep.subr.mxu0 0.0
  %2265 = vmatpush1.msra.mxu0 0.0
  %2266 = vmatprep.subr.mxu0 0.0
  %2267 = vmatpush1.msra.mxu0 0.0
  %2268 = vmatprep.subr.mxu0 0.0
  %2269 = vmatpush1.msra.mxu0 0.0
  %2270 = vmatprep.subr.mxu0 0.0
  %2271 = vmatpush1.msra.mxu0 0.0
  %2272 = vmatprep.subr.mxu0 0.0
  %2273 = vmatpush1.msra.mxu0 0.0
  %2274 = vmatprep.subr.mxu0 0.0
  %2275 = vmatpush1.msra.mxu0 0.0
  %2276 = vmatprep.subr.mxu0 0.0
  %2277 = vmatpush1.msra.mxu0 0.0
  %2278 = vmatprep.subr.mxu0 0.0
  %2279 = vmatpush1.msra.mxu0 0.0
  %2280 = vmatprep.subr.mxu0 0.0
  %2281 = vmatpush1.msra.mxu0 0.0
  %2282 = vmatprep.subr.mxu0 0.0
  %2283 = vmatpush1.msra.mxu0 0.0
  %2284 = vmatprep.subr.mxu0 0.0
  %2285 = vmatpush1.msra.mxu0 0.0
  %2286 = vmatprep.subr.mxu0 0.0
  %2287 = vmatpush1.msra.mxu0 0.0
  %2288 = vmatprep.mubr.f32.mxu0 0.0
  %2289 = vmatmul.mubr.f32.gmra.mrb[0].mxu0 %v2222
  %v2290 = vpop.f32.mrb[0].mxu0
  %v2291 = vadd.f32 %v2218, %v2290
  %v2292 = vpop.f32.mrb[0].mxu0
  %2293 = vdwg.mxu0
  %2294 = vmatprep.subr.mxu0 0.0
  %2295 = vmatpush1.msra.mxu0 %v31
  %2296 = vmatprep.subr.mxu0 0.0
  %2297 = vmatpush1.msra.mxu0 %v32
  %2298 = vmatprep.subr.mxu0 0.0
  %2299 = vmatpush1.msra.mxu0 0.0
  %2300 = vmatprep.subr.mxu0 0.0
  %2301 = vmatpush1.msra.mxu0 0.0
  %2302 = vmatprep.subr.mxu0 0.0
  %2303 = vmatpush1.msra.mxu0 0.0
  %2304 = vmatprep.subr.mxu0 0.0
  %2305 = vmatpush1.msra.mxu0 0.0
  %2306 = vmatprep.subr.mxu0 0.0
  %2307 = vmatpush1.msra.mxu0 0.0
  %2308 = vmatprep.subr.mxu0 0.0
  %2309 = vmatpush1.msra.mxu0 0.0
  %2310 = vmatprep.subr.mxu0 0.0
  %2311 = vmatpush1.msra.mxu0 0.0
  %2312 = vmatprep.subr.mxu0 0.0
  %2313 = vmatpush1.msra.mxu0 0.0
  %2314 = vmatprep.subr.mxu0 0.0
  %2315 = vmatpush1.msra.mxu0 0.0
  %2316 = vmatprep.subr.mxu0 0.0
  %2317 = vmatpush1.msra.mxu0 0.0
  %2318 = vmatprep.subr.mxu0 0.0
  %2319 = vmatpush1.msra.mxu0 0.0
  %2320 = vmatprep.subr.mxu0 0.0
  %2321 = vmatpush1.msra.mxu0 0.0
  %2322 = vmatprep.subr.mxu0 0.0
  %2323 = vmatpush1.msra.mxu0 0.0
  %2324 = vmatprep.subr.mxu0 0.0
  %2325 = vmatpush1.msra.mxu0 0.0
  %2326 = vmatprep.subr.mxu0 0.0
  %2327 = vmatpush1.msra.mxu0 0.0
  %2328 = vmatprep.subr.mxu0 0.0
  %2329 = vmatpush1.msra.mxu0 0.0
  %2330 = vmatprep.subr.mxu0 0.0
  %2331 = vmatpush1.msra.mxu0 0.0
  %2332 = vmatprep.subr.mxu0 0.0
  %2333 = vmatpush1.msra.mxu0 0.0
  %2334 = vmatprep.subr.mxu0 0.0
  %2335 = vmatpush1.msra.mxu0 0.0
  %2336 = vmatprep.subr.mxu0 0.0
  %2337 = vmatpush1.msra.mxu0 0.0
  %2338 = vmatprep.subr.mxu0 0.0
  %2339 = vmatpush1.msra.mxu0 0.0
  %2340 = vmatprep.subr.mxu0 0.0
  %2341 = vmatpush1.msra.mxu0 0.0
  %2342 = vmatprep.subr.mxu0 0.0
  %2343 = vmatpush1.msra.mxu0 0.0
  %2344 = vmatprep.subr.mxu0 0.0
  %2345 = vmatpush1.msra.mxu0 0.0
  %2346 = vmatprep.subr.mxu0 0.0
  %2347 = vmatpush1.msra.mxu0 0.0
  %2348 = vmatprep.subr.mxu0 0.0
  %2349 = vmatpush1.msra.mxu0 0.0
  %2350 = vmatprep.subr.mxu0 0.0
  %2351 = vmatpush1.msra.mxu0 0.0
  %2352 = vmatprep.subr.mxu0 0.0
  %2353 = vmatpush1.msra.mxu0 0.0
  %2354 = vmatprep.subr.mxu0 0.0
  %2355 = vmatpush1.msra.mxu0 0.0
  %2356 = vmatprep.subr.mxu0 0.0
  %2357 = vmatpush1.msra.mxu0 0.0
  %2358 = vmatprep.mubr.f32.mxu0 0.0
  %2359 = vmatmul.mubr.f32.gmra.mrb[0].mxu0 %v2070
  %v2360 = vpop.f32.mrb[0].mxu0
  %v2361 = vadd.f32 0.0, %v2360
  %v2362 = vpop.f32.mrb[0].mxu0
  %2363 = vdwg.mxu0
  %v2364 = vadd.f32 %v2291, %v2361
  %v2365 = vadd.f32 %v2364, %v272
  %v2366 = vtanh.pop %v2365
  %v2368 = vsel %vm193, %v2366, 0
  %2370 = vmatprep.subr.mxu0 0.0
  %2371 = vmatpush1.msra.mxu0 %v34
  %2372 = vmatprep.subr.mxu0 0.0
  %2373 = vmatpush1.msra.mxu0 %v35
  %2374 = vmatprep.subr.mxu0 0.0
  %2375 = vmatpush1.msra.mxu0 0.0
  %2376 = vmatprep.subr.mxu0 0.0
  %2377 = vmatpush1.msra.mxu0 0.0
  %2378 = vmatprep.subr.mxu0 0.0
  %2379 = vmatpush1.msra.mxu0 0.0
  %2380 = vmatprep.subr.mxu0 0.0
  %2381 = vmatpush1.msra.mxu0 0.0
  %2382 = vmatprep.subr.mxu0 0.0
  %2383 = vmatpush1.msra.mxu0 0.0
  %2384 = vmatprep.subr.mxu0 0.0
  %2385 = vmatpush1.msra.mxu0 0.0
  %2386 = vmatprep.subr.mxu0 0.0
  %2387 = vmatpush1.msra.mxu0 0.0
  %2388 = vmatprep.subr.mxu0 0.0
  %2389 = vmatpush1.msra.mxu0 0.0
  %2390 = vmatprep.subr.mxu0 0.0
  %2391 = vmatpush1.msra.mxu0 0.0
  %2392 = vmatprep.subr.mxu0 0.0
  %2393 = vmatpush1.msra.mxu0 0.0
  %2394 = vmatprep.subr.mxu0 0.0
  %2395 = vmatpush1.msra.mxu0 0.0
  %2396 = vmatprep.subr.mxu0 0.0
  %2397 = vmatpush1.msra.mxu0 0.0
  %2398 = vmatprep.subr.mxu0 0.0
  %2399 = vmatpush1.msra.mxu0 0.0
  %2400 = vmatprep.subr.mxu0 0.0
  %2401 = vmatpush1.msra.mxu0 0.0
  %2402 = vmatprep.subr.mxu0 0.0
  %2403 = vmatpush1.msra.mxu0 0.0
  %2404 = vmatprep.subr.mxu0 0.0
  %2405 = vmatpush1.msra.mxu0 0.0
  %2406 = vmatprep.subr.mxu0 0.0
  %2407 = vmatpush1.msra.mxu0 0.0
  %2408 = vmatprep.subr.mxu0 0.0
  %2409 = vmatpush1.msra.mxu0 0.0
  %2410 = vmatprep.subr.mxu0 0.0
  %2411 = vmatpush1.msra.mxu0 0.0
  %2412 = vmatprep.subr.mxu0 0.0
  %2413 = vmatpush1.msra.mxu0 0.0
  %2414 = vmatprep.subr.mxu0 0.0
  %2415 = vmatpush1.msra.mxu0 0.0
  %2416 = vmatprep.subr.mxu0 0.0
  %2417 = vmatpush1.msra.mxu0 0.0
  %2418 = vmatprep.subr.mxu0 0.0
  %2419 = vmatpush1.msra.mxu0 0.0
  %2420 = vmatprep.subr.mxu0 0.0
  %2421 = vmatpush1.msra.mxu0 0.0
  %2422 = vmatprep.subr.mxu0 0.0
  %2423 = vmatpush1.msra.mxu0 0.0
  %2424 = vmatprep.subr.mxu0 0.0
  %2425 = vmatpush1.msra.mxu0 0.0
  %2426 = vmatprep.subr.mxu0 0.0
  %2427 = vmatpush1.msra.mxu0 0.0
  %2428 = vmatprep.subr.mxu0 0.0
  %2429 = vmatpush1.msra.mxu0 0.0
  %2430 = vmatprep.subr.mxu0 0.0
  %2431 = vmatpush1.msra.mxu0 0.0
  %2432 = vmatprep.subr.mxu0 0.0
  %2433 = vmatpush1.msra.mxu0 0.0
  %2434 = vmatprep.mubr.f32.mxu0 0.0
  %2435 = vmatmul.mubr.f32.gmra.mrb[0].mxu0 %v2368
  %v2436 = vpop.f32.mrb[0].mxu0
  %v2437 = vadd.f32 %v280, %v2436
  %v2438 = vpop.f32.mrb[0].mxu0
  %2439 = vdwg.mxu0
  %s2440 = scalar_lea.vmem %s8, 56
  %2441 = vst.msk [vmem:[%s2440] sm:$0xff] %vm39, %v2437
  // Predicated region
  $region34: #{rnn_sequence_model.1} parent=0 // pred_check
    _
  $region35: #{rnn_sequence_model.1} parent=0 // pred_check_branch
    %2443 = sbr.rel (0) target = $region37
  $region36: #{rnn_sequence_model.1} parent=0 // pred_region
    _
  $region37: #{rnn_sequence_model.1} parent=0 // pred_fallthru
    _
  // Predicated region
  $region38: #{rnn_sequence_model.1} parent=0 // pred_check
    _
  $region39: #{rnn_sequence_model.1} parent=0 // pred_check_branch
    %2445 = sbr.rel (0) target = $region41
  $region40: #{rnn_sequence_model.1} parent=0 // pred_region
    _
  $region41: #{rnn_sequence_model.1} parent=0 // pred_fallthru
    _

</llo_original>
